<compile_context>
chip_gen: v5e
topology: v5e:2x2
jax: 0.10.0
libtpu: 0.0.40
codegen_flags: <defaults>
</compile_context>

<pallas_src>
import jax
import jax.numpy as jnp
from jax.experimental import pallas as pl
from jax.experimental.pallas import tpu as pltpu


LANE = 128       # vreg lane width / MXU K alignment
BF16_SUB = 16    # bf16 packs 16 rows per vreg (sublane pack)


def _round_up(n, m):
    return ((n + m - 1) // m) * m


def _pad2d(x, rows, cols):
    r, c = x.shape
    return jnp.pad(x, ((0, rows - r), (0, cols - c)))


def _vmem_limit_bytes():
    cap = 64 * 1024 * 1024  # conservative fallback (v7x per-TC VMEM)
    try:
        cap = int(pltpu.get_tpu_info().vmem_capacity_bytes)
    except Exception:
        pass
    # Leave headroom for Mosaic internal scratch / double buffering:
    # ~56 MiB on v7x (64 MiB physical), capped at ~100 MiB on v5e/v6e (128 MiB).
    return min(cap * 7 // 8, 100 * 1024 * 1024)


def fused_sage_kernel(a1_ref, d1_ref, a2_ref, d2_ref, a3_ref, d3_ref, x_ref,
                      ws1_ref, wn1_ref, b1_ref,
                      ws2_ref, wn2_ref, b2_ref,
                      ws3_ref, wn3_ref, b3_ref,
                      o_ref, h1_ref, h2_ref):
    """All 3 SAGEConv('mean') layers, everything VMEM-resident."""

    def sage_layer(a_ref, inv_deg_ref, h_src, ws_ref, wn_ref, b_ref, relu):
        n_dst = a_ref.shape[0]
        # Mean aggregation: exact 0/1 adjacency on the MXU (f32 accumulate),
        # then f32 reciprocal-degree scaling on the VPU (no bf16 rounding of 1/deg).
        neigh = jnp.dot(a_ref[...], h_src, preferred_element_type=jnp.float32)
        neigh = neigh * inv_deg_ref[...]
        # dst nodes are the first n_dst src nodes (DGL block convention);
        # n_dst is a multiple of 16 so this bf16 slice is a zero-cost view.
        h_self = h_src[0:n_dst, :]
        # Two accumulated MXU matmuls (no concat materialization, no casts).
        out = (jnp.dot(h_self, ws_ref[...], preferred_element_type=jnp.float32)
               + jnp.dot(neigh.astype(jnp.bfloat16), wn_ref[...],
                         preferred_element_type=jnp.float32)
               + b_ref[...])                      # bias / ReLU stay f32 on the VPU
        if relu:
            out = jnp.maximum(out, 0.0)
        return out

    # NOTE: padded dst rows of h1/h2 carry relu(bias) filler; the next layer's
    # zero-padded A columns ignore them and the final host-side slice strips them.
    h1_ref[...] = sage_layer(a1_ref, d1_ref, x_ref[...],
                             ws1_ref, wn1_ref, b1_ref, True).astype(jnp.bfloat16)
    h2_ref[...] = sage_layer(a2_ref, d2_ref, h1_ref[...],
                             ws2_ref, wn2_ref, b2_ref, True).astype(jnp.bfloat16)
    o_ref[...] = sage_layer(a3_ref, d3_ref, h2_ref[...],
                            ws3_ref, wn3_ref, b3_ref, False)


@jax.jit
def _fused_forward(a1, d1, a2, d2, a3, d3, x,
                   ws1, wn1, b1, ws2, wn2, b2, ws3, wn3, b3):
    n_pad1 = a1.shape[0]
    n_pad2 = a2.shape[0]
    n_pad3 = a3.shape[0]
    d_out1 = ws1.shape[1]
    d_out2 = ws2.shape[1]
    d_out3 = ws3.shape[1]

    def full(shape):
        nd = len(shape)
        return pl.BlockSpec(shape, lambda i, _nd=nd: (0,) * _nd)

    args = (a1, d1, a2, d2, a3, d3, x,
            ws1, wn1, b1, ws2, wn2, b2, ws3, wn3, b3)

    return pl.pallas_call(
        fused_sage_kernel,
        out_shape=jax.ShapeDtypeStruct((n_pad3, d_out3), jnp.float32),
        grid=(1,),
        in_specs=[full(a.shape) for a in args],
        out_specs=full((n_pad3, d_out3)),
        scratch_shapes=[
            pltpu.VMEM((n_pad1, d_out1), jnp.bfloat16),   # h1 (consumed only as bf16)
            pltpu.VMEM((n_pad2, d_out2), jnp.bfloat16),   # h2
        ],
        compiler_params=pltpu.CompilerParams(
            dimension_semantics=("arbitrary",),
            vmem_limit_bytes=_vmem_limit_bytes()),
    )(*args)


def pack_sage(blocks01, x, params):
    """One-time host-side packing (pad / normalize / cast) so the per-call
    forward is just one pallas_call with no extra XLA launches.

    blocks01: 3 dense 0/1 adjacencies A_l [n_dst_l, n_src_l] (f32)
    x:        [n_src_0, in_feats] f32 source-node features
    params:   3 tuples (W_self [d_in,d_out], W_neigh [d_in,d_out], bias [1,d_out])
    """
    assert len(blocks01) == 3 and len(params) == 3

    n_true = [blocks01[0].shape[1]] + [a.shape[0] for a in blocks01]
    # src/contraction node dims -> 128 (dense MXU K); final dst count -> 16
    # (bf16 sublane pack, keeps the h_self slice a zero-cost view).
    n_pad = [_round_up(n, LANE) for n in n_true[:3]] + \
            [_round_up(n_true[3], BF16_SUB)]
    d_in = [p[0].shape[0] for p in params]
    d_out = [p[0].shape[1] for p in params]
    d_in_p = [_round_up(d, LANE) for d in d_in]
    d_out_p = [_round_up(d, LANE) for d in d_out]

    a_p, deg_p = [], []
    for l, a in enumerate(blocks01):
        a01 = (a > 0).astype(jnp.float32)
        a_p.append(_pad2d(a01, n_pad[l + 1], n_pad[l]).astype(jnp.bfloat16))
        inv_deg = 1.0 / jnp.maximum(a01.sum(axis=1, keepdims=True), 1.0)
        deg_p.append(_pad2d(inv_deg, n_pad[l + 1], 1).astype(jnp.float32))

    ws_p, wn_p, b_p = [], [], []
    for l, (ws, wn, b) in enumerate(params):
        ws_p.append(_pad2d(ws, d_in_p[l], d_out_p[l]).astype(jnp.bfloat16))
        wn_p.append(_pad2d(wn, d_in_p[l], d_out_p[l]).astype(jnp.bfloat16))
        b_p.append(_pad2d(b.reshape(1, -1), 1, d_out_p[l]).astype(jnp.float32))

    x_p = _pad2d(x, n_pad[0], d_in_p[0]).astype(jnp.bfloat16)

    args = (a_p[0], deg_p[0], a_p[1], deg_p[1], a_p[2], deg_p[2], x_p,
            ws_p[0], wn_p[0], b_p[0],
            ws_p[1], wn_p[1], b_p[1],
            ws_p[2], wn_p[2], b_p[2])
    args = jax.tree_util.tree_map(jax.device_put, args)
    return {"args": args, "n_out": n_true[3], "n_classes": d_out[2]}


def sage_forward_fused(packed):
    out_pad = _fused_forward(*packed["args"])
    # Strip padding: real dst nodes / real classes only.
    return out_pad[:packed["n_out"], :packed["n_classes"]]


def _init_linear(key, d_in, d_out):
    # Xavier-uniform-ish deterministic init (DGL uses xavier_uniform_).
    limit = (6.0 / (d_in + d_out)) ** 0.5
    return jax.random.uniform(key, (d_in, d_out), jnp.float32, -limit, limit)


if __name__ == "__main__":
    in_feats, n_hidden, n_classes = 16, 32, 8
    # Bipartite block sizes (src shrinks layer by layer, as in neighbor sampling).
    n_nodes = [32, 24, 16, 8]   # layer l: n_src = n_nodes[l], n_dst = n_nodes[l+1]

    root = jax.random.PRNGKey(0)
    keys = jax.random.split(root, 16)

    # Graph blocks as dense 0/1 adjacencies (mean aggregation applies 1/deg).
    blocks01 = [
        jax.random.bernoulli(keys[0], 0.4, (n_nodes[1], n_nodes[0])).astype(jnp.float32),
        jax.random.bernoulli(keys[1], 0.4, (n_nodes[2], n_nodes[1])).astype(jnp.float32),
        jax.random.bernoulli(keys[2], 0.4, (n_nodes[3], n_nodes[2])).astype(jnp.float32),
    ]

    # Layer parameters: (W_self, W_neigh, bias) with DGL SAGEConv shapes.
    dims = [(in_feats, n_hidden), (n_hidden, n_hidden), (n_hidden, n_classes)]
    params = []
    for l, (di, do) in enumerate(dims):
        w_self = _init_linear(keys[3 + 2 * l], di, do)
        w_neigh = _init_linear(keys[4 + 2 * l], di, do)
        bias = jnp.zeros((1, do), jnp.float32)
        params.append((w_self, w_neigh, bias))

    # Input node features for the outermost block's src nodes.
    x = jax.random.normal(keys[10], (n_nodes[0], in_feats), jnp.float32)

    packed = pack_sage(blocks01, x, params)     # one-time preprocessing
    out = sage_forward_fused(packed)            # single fused pallas_call
    out = jax.block_until_ready(out)
    assert out.shape == (n_nodes[-1], n_classes)

    # Matched reference: same dtype recipe / op order as the kernel (tight check).
    h = x.astype(jnp.bfloat16)
    for l, (a01, (ws, wn, b)) in enumerate(zip(blocks01, params)):
        n_dst = a01.shape[0]
        inv_deg = 1.0 / jnp.maximum(a01.sum(axis=1, keepdims=True), 1.0)
        neigh = jnp.dot(a01.astype(jnp.bfloat16), h,
                        preferred_element_type=jnp.float32) * inv_deg
        r = (jnp.dot(h[:n_dst], ws.astype(jnp.bfloat16),
                     preferred_element_type=jnp.float32)
             + jnp.dot(neigh.astype(jnp.bfloat16), wn.astype(jnp.bfloat16),
                       preferred_element_type=jnp.float32)
             + b)
        if l != 2:
            h = jnp.maximum(r, 0.0).astype(jnp.bfloat16)
        else:
            h = r
    assert jnp.allclose(out, h, atol=5e-3, rtol=5e-3)

    # Loose check against exact f32 math (tolerance covers bf16 rounding).
    hf = x
    for l, (a01, (ws, wn, b)) in enumerate(zip(blocks01, params)):
        deg = jnp.maximum(a01.sum(axis=1, keepdims=True), 1.0)
        r = hf[:a01.shape[0]] @ ws + ((a01 @ hf) / deg) @ wn + b
        hf = jnp.maximum(r, 0.0) if l != 2 else r
    assert jnp.allclose(out, hf, atol=1e-1, rtol=1e-1)

    print("KERNEL_OK")
</pallas_src>

<mosaic_0001>
module attributes {stable_mosaic.version = 11 : i64} {
  func.func @fused_sage_kernel(%arg0: i32, %arg1: memref<128x128xbf16, #tpu.memory_space<vmem>>, %arg2: memref<128x1xf32, #tpu.memory_space<vmem>>, %arg3: memref<128x128xbf16, #tpu.memory_space<vmem>>, %arg4: memref<128x1xf32, #tpu.memory_space<vmem>>, %arg5: memref<16x128xbf16, #tpu.memory_space<vmem>>, %arg6: memref<16x1xf32, #tpu.memory_space<vmem>>, %arg7: memref<128x128xbf16, #tpu.memory_space<vmem>>, %arg8: memref<128x128xbf16, #tpu.memory_space<vmem>>, %arg9: memref<128x128xbf16, #tpu.memory_space<vmem>>, %arg10: memref<1x128xf32, #tpu.memory_space<vmem>>, %arg11: memref<128x128xbf16, #tpu.memory_space<vmem>>, %arg12: memref<128x128xbf16, #tpu.memory_space<vmem>>, %arg13: memref<1x128xf32, #tpu.memory_space<vmem>>, %arg14: memref<128x128xbf16, #tpu.memory_space<vmem>>, %arg15: memref<128x128xbf16, #tpu.memory_space<vmem>>, %arg16: memref<1x128xf32, #tpu.memory_space<vmem>>, %arg17: memref<16x128xf32, #tpu.memory_space<vmem>>, %arg18: memref<128x128xbf16, #tpu.memory_space<vmem>>, %arg19: memref<128x128xbf16, #tpu.memory_space<vmem>>) attributes {dimension_semantics = [#tpu.dimension_semantics<arbitrary>], iteration_bounds = array<i64: 1>, scalar_prefetch = 0 : i64, scratch_operands = 2 : i64, tpu.core_type = #tpu.core_type<tc>, window_params = [{pipeline_mode = #tpu.pipeline_mode<synchronous>, transform_indices = @transform_0, window_bounds = array<i64: 128, 128>}, {pipeline_mode = #tpu.pipeline_mode<synchronous>, transform_indices = @transform_1, window_bounds = array<i64: 128, 1>}, {pipeline_mode = #tpu.pipeline_mode<synchronous>, transform_indices = @transform_2, window_bounds = array<i64: 128, 128>}, {pipeline_mode = #tpu.pipeline_mode<synchronous>, transform_indices = @transform_3, window_bounds = array<i64: 128, 1>}, {pipeline_mode = #tpu.pipeline_mode<synchronous>, transform_indices = @transform_4, window_bounds = array<i64: 16, 128>}, {pipeline_mode = #tpu.pipeline_mode<synchronous>, transform_indices = @transform_5, window_bounds = array<i64: 16, 1>}, {pipeline_mode = #tpu.pipeline_mode<synchronous>, transform_indices = @transform_6, window_bounds = array<i64: 128, 128>}, {pipeline_mode = #tpu.pipeline_mode<synchronous>, transform_indices = @transform_7, window_bounds = array<i64: 128, 128>}, {pipeline_mode = #tpu.pipeline_mode<synchronous>, transform_indices = @transform_8, window_bounds = array<i64: 128, 128>}, {pipeline_mode = #tpu.pipeline_mode<synchronous>, transform_indices = @transform_9, window_bounds = array<i64: 1, 128>}, {pipeline_mode = #tpu.pipeline_mode<synchronous>, transform_indices = @transform_10, window_bounds = array<i64: 128, 128>}, {pipeline_mode = #tpu.pipeline_mode<synchronous>, transform_indices = @transform_11, window_bounds = array<i64: 128, 128>}, {pipeline_mode = #tpu.pipeline_mode<synchronous>, transform_indices = @transform_12, window_bounds = array<i64: 1, 128>}, {pipeline_mode = #tpu.pipeline_mode<synchronous>, transform_indices = @transform_13, window_bounds = array<i64: 128, 128>}, {pipeline_mode = #tpu.pipeline_mode<synchronous>, transform_indices = @transform_14, window_bounds = array<i64: 128, 128>}, {pipeline_mode = #tpu.pipeline_mode<synchronous>, transform_indices = @transform_15, window_bounds = array<i64: 1, 128>}, {pipeline_mode = #tpu.pipeline_mode<synchronous>, transform_indices = @transform_16, window_bounds = array<i64: 16, 128>}]} {
    %c0 = arith.constant 0 : index
    %c0_0 = arith.constant 0 : index
    %0 = vector.load %arg7[%c0, %c0_0] : memref<128x128xbf16, #tpu.memory_space<vmem>>, vector<128x128xbf16>
    %c0_1 = arith.constant 0 : index
    %c0_2 = arith.constant 0 : index
    %1 = vector.load %arg1[%c0_1, %c0_2] : memref<128x128xbf16, #tpu.memory_space<vmem>>, vector<128x128xbf16>
    %cst = arith.constant dense<0.000000e+00> : vector<128x128xf32>
    %2 = tpu.matmul %1, %0, %cst {dimension_numbers = #tpu.dot_dimension_numbers<[1], [0], [0], [1], [0, 0, 1, 1], [], []>} : vector<128x128xbf16>, vector<128x128xbf16>, vector<128x128xf32> -> vector<128x128xf32>
    %c0_3 = arith.constant 0 : index
    %c0_4 = arith.constant 0 : index
    %3 = vector.load %arg2[%c0_3, %c0_4] : memref<128x1xf32, #tpu.memory_space<vmem>>, vector<128x1xf32>
    %4 = vector.broadcast %3 : vector<128x1xf32> to vector<128x128xf32>
    %5 = arith.mulf %2, %4 : vector<128x128xf32>
    %c0_5 = arith.constant 0 : index
    %c0_6 = arith.constant 0 : index
    %6 = vector.load %arg8[%c0_5, %c0_6] : memref<128x128xbf16, #tpu.memory_space<vmem>>, vector<128x128xbf16>
    %cst_7 = arith.constant dense<0.000000e+00> : vector<128x128xf32>
    %7 = tpu.matmul %0, %6, %cst_7 {dimension_numbers = #tpu.dot_dimension_numbers<[1], [0], [0], [1], [0, 0, 1, 1], [], []>} : vector<128x128xbf16>, vector<128x128xbf16>, vector<128x128xf32> -> vector<128x128xf32>
    %8 = arith.truncf %5 : vector<128x128xf32> to vector<128x128xbf16>
    %c0_8 = arith.constant 0 : index
    %c0_9 = arith.constant 0 : index
    %9 = vector.load %arg9[%c0_8, %c0_9] : memref<128x128xbf16, #tpu.memory_space<vmem>>, vector<128x128xbf16>
    %cst_10 = arith.constant dense<0.000000e+00> : vector<128x128xf32>
    %10 = tpu.matmul %8, %9, %cst_10 {dimension_numbers = #tpu.dot_dimension_numbers<[1], [0], [0], [1], [0, 0, 1, 1], [], []>} : vector<128x128xbf16>, vector<128x128xbf16>, vector<128x128xf32> -> vector<128x128xf32>
    %11 = arith.addf %7, %10 : vector<128x128xf32>
    %c0_11 = arith.constant 0 : index
    %c0_12 = arith.constant 0 : index
    %12 = vector.load %arg10[%c0_11, %c0_12] : memref<1x128xf32, #tpu.memory_space<vmem>>, vector<1x128xf32>
    %13 = vector.broadcast %12 : vector<1x128xf32> to vector<128x128xf32>
    %14 = arith.addf %11, %13 : vector<128x128xf32>
    %cst_13 = arith.constant 0.000000e+00 : f32
    %15 = vector.broadcast %cst_13 : f32 to vector<128x128xf32>
    %16 = arith.maximumf %14, %15 : vector<128x128xf32>
    %17 = arith.truncf %16 : vector<128x128xf32> to vector<128x128xbf16>
    %c0_14 = arith.constant 0 : index
    %c0_15 = arith.constant 0 : index
    %18 = vector.load %arg18[%c0_14, %c0_15] : memref<128x128xbf16, #tpu.memory_space<vmem>>, vector<128x128xbf16>
    tpu.vector_store %arg18[%c0_14, %c0_15], %17 {strides = array<i32>} : memref<128x128xbf16, #tpu.memory_space<vmem>>, vector<128x128xbf16>,
    %c0_16 = arith.constant 0 : index
    %c0_17 = arith.constant 0 : index
    %19 = vector.load %arg18[%c0_16, %c0_17] : memref<128x128xbf16, #tpu.memory_space<vmem>>, vector<128x128xbf16>
    %c0_18 = arith.constant 0 : index
    %c0_19 = arith.constant 0 : index
    %20 = vector.load %arg3[%c0_18, %c0_19] : memref<128x128xbf16, #tpu.memory_space<vmem>>, vector<128x128xbf16>
    %cst_20 = arith.constant dense<0.000000e+00> : vector<128x128xf32>
    %21 = tpu.matmul %20, %19, %cst_20 {dimension_numbers = #tpu.dot_dimension_numbers<[1], [0], [0], [1], [0, 0, 1, 1], [], []>} : vector<128x128xbf16>, vector<128x128xbf16>, vector<128x128xf32> -> vector<128x128xf32>
    %c0_21 = arith.constant 0 : index
    %c0_22 = arith.constant 0 : index
    %22 = vector.load %arg4[%c0_21, %c0_22] : memref<128x1xf32, #tpu.memory_space<vmem>>, vector<128x1xf32>
    %23 = vector.broadcast %22 : vector<128x1xf32> to vector<128x128xf32>
    %24 = arith.mulf %21, %23 : vector<128x128xf32>
    %c0_23 = arith.constant 0 : index
    %c0_24 = arith.constant 0 : index
    %25 = vector.load %arg11[%c0_23, %c0_24] : memref<128x128xbf16, #tpu.memory_space<vmem>>, vector<128x128xbf16>
    %cst_25 = arith.constant dense<0.000000e+00> : vector<128x128xf32>
    %26 = tpu.matmul %19, %25, %cst_25 {dimension_numbers = #tpu.dot_dimension_numbers<[1], [0], [0], [1], [0, 0, 1, 1], [], []>} : vector<128x128xbf16>, vector<128x128xbf16>, vector<128x128xf32> -> vector<128x128xf32>
    %27 = arith.truncf %24 : vector<128x128xf32> to vector<128x128xbf16>
    %c0_26 = arith.constant 0 : index
    %c0_27 = arith.constant 0 : index
    %28 = vector.load %arg12[%c0_26, %c0_27] : memref<128x128xbf16, #tpu.memory_space<vmem>>, vector<128x128xbf16>
    %cst_28 = arith.constant dense<0.000000e+00> : vector<128x128xf32>
    %29 = tpu.matmul %27, %28, %cst_28 {dimension_numbers = #tpu.dot_dimension_numbers<[1], [0], [0], [1], [0, 0, 1, 1], [], []>} : vector<128x128xbf16>, vector<128x128xbf16>, vector<128x128xf32> -> vector<128x128xf32>
    %30 = arith.addf %26, %29 : vector<128x128xf32>
    %c0_29 = arith.constant 0 : index
    %c0_30 = arith.constant 0 : index
    %31 = vector.load %arg13[%c0_29, %c0_30] : memref<1x128xf32, #tpu.memory_space<vmem>>, vector<1x128xf32>
    %32 = vector.broadcast %31 : vector<1x128xf32> to vector<128x128xf32>
    %33 = arith.addf %30, %32 : vector<128x128xf32>
    %cst_31 = arith.constant 0.000000e+00 : f32
    %34 = vector.broadcast %cst_31 : f32 to vector<128x128xf32>
    %35 = arith.maximumf %33, %34 : vector<128x128xf32>
    %36 = arith.truncf %35 : vector<128x128xf32> to vector<128x128xbf16>
    %c0_32 = arith.constant 0 : index
    %c0_33 = arith.constant 0 : index
    %37 = vector.load %arg19[%c0_32, %c0_33] : memref<128x128xbf16, #tpu.memory_space<vmem>>, vector<128x128xbf16>
    tpu.vector_store %arg19[%c0_32, %c0_33], %36 {strides = array<i32>} : memref<128x128xbf16, #tpu.memory_space<vmem>>, vector<128x128xbf16>,
    %c0_34 = arith.constant 0 : index
    %c0_35 = arith.constant 0 : index
    %38 = vector.load %arg19[%c0_34, %c0_35] : memref<128x128xbf16, #tpu.memory_space<vmem>>, vector<128x128xbf16>
    %c0_36 = arith.constant 0 : index
    %c0_37 = arith.constant 0 : index
    %39 = vector.load %arg5[%c0_36, %c0_37] : memref<16x128xbf16, #tpu.memory_space<vmem>>, vector<16x128xbf16>
    %cst_38 = arith.constant dense<0.000000e+00> : vector<16x128xf32>
    %40 = tpu.matmul %39, %38, %cst_38 {dimension_numbers = #tpu.dot_dimension_numbers<[1], [0], [0], [1], [0, 0, 1, 1], [], []>} : vector<16x128xbf16>, vector<128x128xbf16>, vector<16x128xf32> -> vector<16x128xf32>
    %c0_39 = arith.constant 0 : index
    %c0_40 = arith.constant 0 : index
    %41 = vector.load %arg6[%c0_39, %c0_40] : memref<16x1xf32, #tpu.memory_space<vmem>>, vector<16x1xf32>
    %42 = vector.broadcast %41 : vector<16x1xf32> to vector<16x128xf32>
    %43 = arith.mulf %40, %42 : vector<16x128xf32>
    %44 = vector.extract_strided_slice %38 {offsets = [0, 0], sizes = [16, 128], strides = [1, 1]} : vector<128x128xbf16> to vector<16x128xbf16>
    %c0_41 = arith.constant 0 : index
    %c0_42 = arith.constant 0 : index
    %45 = vector.load %arg14[%c0_41, %c0_42] : memref<128x128xbf16, #tpu.memory_space<vmem>>, vector<128x128xbf16>
    %cst_43 = arith.constant dense<0.000000e+00> : vector<16x128xf32>
    %46 = tpu.matmul %44, %45, %cst_43 {dimension_numbers = #tpu.dot_dimension_numbers<[1], [0], [0], [1], [0, 0, 1, 1], [], []>} : vector<16x128xbf16>, vector<128x128xbf16>, vector<16x128xf32> -> vector<16x128xf32>
    %47 = arith.truncf %43 : vector<16x128xf32> to vector<16x128xbf16>
    %c0_44 = arith.constant 0 : index
    %c0_45 = arith.constant 0 : index
    %48 = vector.load %arg15[%c0_44, %c0_45] : memref<128x128xbf16, #tpu.memory_space<vmem>>, vector<128x128xbf16>
    %cst_46 = arith.constant dense<0.000000e+00> : vector<16x128xf32>
    %49 = tpu.matmul %47, %48, %cst_46 {dimension_numbers = #tpu.dot_dimension_numbers<[1], [0], [0], [1], [0, 0, 1, 1], [], []>} : vector<16x128xbf16>, vector<128x128xbf16>, vector<16x128xf32> -> vector<16x128xf32>
    %50 = arith.addf %46, %49 : vector<16x128xf32>
    %c0_47 = arith.constant 0 : index
    %c0_48 = arith.constant 0 : index
    %51 = vector.load %arg16[%c0_47, %c0_48] : memref<1x128xf32, #tpu.memory_space<vmem>>, vector<1x128xf32>
    %52 = vector.broadcast %51 : vector<1x128xf32> to vector<16x128xf32>
    %53 = arith.addf %50, %52 : vector<16x128xf32>
    %c0_49 = arith.constant 0 : index
    %c0_50 = arith.constant 0 : index
    %54 = vector.load %arg17[%c0_49, %c0_50] : memref<16x128xf32, #tpu.memory_space<vmem>>, vector<16x128xf32>
    tpu.vector_store %arg17[%c0_49, %c0_50], %53 {strides = array<i32>} : memref<16x128xf32, #tpu.memory_space<vmem>>, vector<16x128xf32>,
    return
  }
  func.func @transform_0(%arg0: i32) -> (i32, i32) {
    %c0_i32 = arith.constant 0 : i32
    %c0_i32_0 = arith.constant 0 : i32
    %c0_i32_1 = arith.constant 0 : i32
    return %c0_i32, %c0_i32_0 : i32, i32
  }
  func.func @transform_1(%arg0: i32) -> (i32, i32) {
    %c0_i32 = arith.constant 0 : i32
    %c0_i32_0 = arith.constant 0 : i32
    %c0_i32_1 = arith.constant 0 : i32
    return %c0_i32, %c0_i32_0 : i32, i32
  }
  func.func @transform_2(%arg0: i32) -> (i32, i32) {
    %c0_i32 = arith.constant 0 : i32
    %c0_i32_0 = arith.constant 0 : i32
    %c0_i32_1 = arith.constant 0 : i32
    return %c0_i32, %c0_i32_0 : i32, i32
  }
  func.func @transform_3(%arg0: i32) -> (i32, i32) {
    %c0_i32 = arith.constant 0 : i32
    %c0_i32_0 = arith.constant 0 : i32
    %c0_i32_1 = arith.constant 0 : i32
    return %c0_i32, %c0_i32_0 : i32, i32
  }
  func.func @transform_4(%arg0: i32) -> (i32, i32) {
    %c0_i32 = arith.constant 0 : i32
    %c0_i32_0 = arith.constant 0 : i32
    %c0_i32_1 = arith.constant 0 : i32
    return %c0_i32, %c0_i32_0 : i32, i32
  }
  func.func @transform_5(%arg0: i32) -> (i32, i32) {
    %c0_i32 = arith.constant 0 : i32
    %c0_i32_0 = arith.constant 0 : i32
    %c0_i32_1 = arith.constant 0 : i32
    return %c0_i32, %c0_i32_0 : i32, i32
  }
  func.func @transform_6(%arg0: i32) -> (i32, i32) {
    %c0_i32 = arith.constant 0 : i32
    %c0_i32_0 = arith.constant 0 : i32
    %c0_i32_1 = arith.constant 0 : i32
    return %c0_i32, %c0_i32_0 : i32, i32
  }
  func.func @transform_7(%arg0: i32) -> (i32, i32) {
    %c0_i32 = arith.constant 0 : i32
    %c0_i32_0 = arith.constant 0 : i32
    %c0_i32_1 = arith.constant 0 : i32
    return %c0_i32, %c0_i32_0 : i32, i32
  }
  func.func @transform_8(%arg0: i32) -> (i32, i32) {
    %c0_i32 = arith.constant 0 : i32
    %c0_i32_0 = arith.constant 0 : i32
    %c0_i32_1 = arith.constant 0 : i32
    return %c0_i32, %c0_i32_0 : i32, i32
  }
  func.func @transform_9(%arg0: i32) -> (i32, i32) {
    %c0_i32 = arith.constant 0 : i32
    %c0_i32_0 = arith.constant 0 : i32
    %c0_i32_1 = arith.constant 0 : i32
    return %c0_i32, %c0_i32_0 : i32, i32
  }
  func.func @transform_10(%arg0: i32) -> (i32, i32) {
    %c0_i32 = arith.constant 0 : i32
    %c0_i32_0 = arith.constant 0 : i32
    %c0_i32_1 = arith.constant 0 : i32
    return %c0_i32, %c0_i32_0 : i32, i32
  }
  func.func @transform_11(%arg0: i32) -> (i32, i32) {
    %c0_i32 = arith.constant 0 : i32
    %c0_i32_0 = arith.constant 0 : i32
    %c0_i32_1 = arith.constant 0 : i32
    return %c0_i32, %c0_i32_0 : i32, i32
  }
  func.func @transform_12(%arg0: i32) -> (i32, i32) {
    %c0_i32 = arith.constant 0 : i32
    %c0_i32_0 = arith.constant 0 : i32
    %c0_i32_1 = arith.constant 0 : i32
    return %c0_i32, %c0_i32_0 : i32, i32
  }
  func.func @transform_13(%arg0: i32) -> (i32, i32) {
    %c0_i32 = arith.constant 0 : i32
    %c0_i32_0 = arith.constant 0 : i32
    %c0_i32_1 = arith.constant 0 : i32
    return %c0_i32, %c0_i32_0 : i32, i32
  }
  func.func @transform_14(%arg0: i32) -> (i32, i32) {
    %c0_i32 = arith.constant 0 : i32
    %c0_i32_0 = arith.constant 0 : i32
    %c0_i32_1 = arith.constant 0 : i32
    return %c0_i32, %c0_i32_0 : i32, i32
  }
  func.func @transform_15(%arg0: i32) -> (i32, i32) {
    %c0_i32 = arith.constant 0 : i32
    %c0_i32_0 = arith.constant 0 : i32
    %c0_i32_1 = arith.constant 0 : i32
    return %c0_i32, %c0_i32_0 : i32, i32
  }
  func.func @transform_16(%arg0: i32) -> (i32, i32) {
    %c0_i32 = arith.constant 0 : i32
    %c0_i32_0 = arith.constant 0 : i32
    %c0_i32_1 = arith.constant 0 : i32
    return %c0_i32, %c0_i32_0 : i32, i32
  }
}

</mosaic_0001>

<llo_original>
// kernel: _fused_forward.1
$region0: #{_fused_forward.1}
  #allocation0 [shape = 'u32[]', space=smem, size = 0x4, offset = 0x4, fixed_abs, tag = 'smem constant byte address 0x4 - core index']
  #allocation1 [shape = 'u32[72,128]{1,0:T(1,128)}', space=vmem, size = 0x9000, scoped, tag = 'internal scratch']
  #allocation2 [shape = 'bf16[128,128]{1,0:T(8,128)(2,1)}', space=vmem, size = 0x8000, scoped, tag = 'scratch operand']
  #allocation3 [shape = 'bf16[128,128]{1,0:T(8,128)(2,1)}', space=vmem, size = 0x8000, scoped, tag = 'scratch operand']
  %s0 = inlined_call_operand.vmem [shape: bf16[128,128], index: 0, kind: input, shape index: {}]
  %s1 = inlined_call_operand.vmem [shape: f32[128,1], index: 1, kind: input, shape index: {}]
  %s2 = inlined_call_operand.vmem [shape: bf16[128,128], index: 2, kind: input, shape index: {}]
  %s3 = inlined_call_operand.vmem [shape: f32[128,1], index: 3, kind: input, shape index: {}]
  %s4 = inlined_call_operand.vmem [shape: bf16[16,128], index: 4, kind: input, shape index: {}]
  %s5 = inlined_call_operand.vmem [shape: f32[16,1], index: 5, kind: input, shape index: {}]
  %s6 = inlined_call_operand.vmem [shape: bf16[128,128], index: 6, kind: input, shape index: {}]
  %s7 = inlined_call_operand.vmem [shape: bf16[128,128], index: 7, kind: input, shape index: {}]
  %s8 = inlined_call_operand.hbm [shape: bf16[128,128], index: 8, kind: input, shape index: {}]
  %s9 = inlined_call_operand.vmem [shape: f32[1,128], index: 9, kind: input, shape index: {}]
  %s10 = inlined_call_operand.hbm [shape: bf16[128,128], index: 10, kind: input, shape index: {}]
  %s11 = inlined_call_operand.hbm [shape: bf16[128,128], index: 11, kind: input, shape index: {}]
  %s12 = inlined_call_operand.vmem [shape: f32[1,128], index: 12, kind: input, shape index: {}]
  %s13 = inlined_call_operand.hbm [shape: bf16[128,128], index: 13, kind: input, shape index: {}]
  %s14 = inlined_call_operand.hbm [shape: bf16[128,128], index: 14, kind: input, shape index: {}]
  %s15 = inlined_call_operand.vmem [shape: f32[1,128], index: 15, kind: input, shape index: {}]
  %s16 = inlined_call_operand.hbm [shape: f32[16,128], index: 16, kind: output, shape index: {}]
  %s17 = sld [smem:[#allocation0]]
  $region94: #{_fused_forward.1} parent=0
    _
  %s19 = ssub.s32 1, %s17
  %s20 = scalar_select 0, %s19, %s17
  $region1: #{_fused_forward.1} parent=0
    #allocation4 [shape = 'u8[32768]{0}', space=vmem, size = 0x8000, scoped, tag = 'input window, operand 8, single buffered']
    #allocation5 [shape = 's32[1]{0}', space=sflag, size = 0x4, scoped, tag = 'scoped memory for _fused_forward.1']
    #allocation6 [shape = 's32[1]{0}', space=sflag, size = 0x4, scoped, tag = 'scoped memory for _fused_forward.1']
    #allocation7 [shape = 'u8[32768]{0}', space=vmem, size = 0x8000, scoped, tag = 'input window, operand 10, single buffered']
    #allocation8 [shape = 's32[1]{0}', space=sflag, size = 0x4, scoped, tag = 'scoped memory for _fused_forward.1']
    #allocation9 [shape = 'u8[32768]{0}', space=vmem, size = 0x8000, scoped, tag = 'input window, operand 11, single buffered']
    #allocation10 [shape = 'u8[32768]{0}', space=vmem, size = 0x8000, scoped, tag = 'input window, operand 13, single buffered']
    #allocation11 [shape = 's32[1]{0}', space=sflag, size = 0x4, scoped, tag = 'scoped memory for _fused_forward.1']
    #allocation12 [shape = 'u8[32768]{0}', space=vmem, size = 0x8000, scoped, tag = 'input window, operand 14, single buffered']
    #allocation13 [shape = 'u8[8192]{0}', space=vmem, size = 0x2000, scoped, tag = 'output window, operand 0, single buffered']
    %21 = vsyncpa [#allocation5], 0
    %22 = vsyncpa [#allocation8], 0
    %23 = vsyncpa [#allocation11], 0
    %24 = vsyncpa [#allocation6], 0
    // Predicated region
    $region2: #{_fused_forward.1} parent=1 // pred_check
      _
    $region3: #{_fused_forward.1} parent=1 // pred_check_branch
      %26 = sbr.rel (0) target = $region5
    $region4: #{_fused_forward.1} parent=1 // pred_region
      _
    $region5: #{_fused_forward.1} parent=1 // pred_fallthru
      _
    // Predicated region
    $region6: #{_fused_forward.1} parent=1 // pred_check
      _
    $region7: #{_fused_forward.1} parent=1 // pred_check_branch
      %28 = sbr.rel (0) target = $region9
    $region8: #{_fused_forward.1} parent=1 // pred_region
      _
    $region9: #{_fused_forward.1} parent=1 // pred_fallthru
      _
    // Predicated region
    $region10: #{_fused_forward.1} parent=1 // pred_check
      _
    $region11: #{_fused_forward.1} parent=1 // pred_check_branch
      %30 = sbr.rel (0) target = $region13
    $region12: #{_fused_forward.1} parent=1 // pred_region
      _
    $region13: #{_fused_forward.1} parent=1 // pred_fallthru
      _
    // Predicated region
    $region14: #{_fused_forward.1} parent=1 // pred_check
      _
    $region15: #{_fused_forward.1} parent=1 // pred_check_branch
      %32 = sbr.rel (0) target = $region17
    $region16: #{_fused_forward.1} parent=1 // pred_region
      _
    $region17: #{_fused_forward.1} parent=1 // pred_fallthru
      _
    // Predicated region
    $region18: #{_fused_forward.1} parent=1 // pred_check
      _
    $region19: #{_fused_forward.1} parent=1 // pred_check_branch
      %34 = sbr.rel (0) target = $region21
    $region20: #{_fused_forward.1} parent=1 // pred_region
      _
    $region21: #{_fused_forward.1} parent=1 // pred_fallthru
      _
    // Predicated region
    $region22: #{_fused_forward.1} parent=1 // pred_check
      _
    $region23: #{_fused_forward.1} parent=1 // pred_check_branch
      %36 = sbr.rel (0) target = $region25
    $region24: #{_fused_forward.1} parent=1 // pred_region
      _
    $region25: #{_fused_forward.1} parent=1 // pred_fallthru
      _
    // Predicated region
    $region26: #{_fused_forward.1} parent=1 // pred_check
      _
    $region27: #{_fused_forward.1} parent=1 // pred_check_branch
      %38 = sbr.rel (0) target = $region29
    $region28: #{_fused_forward.1} parent=1 // pred_region
      _
    $region29: #{_fused_forward.1} parent=1 // pred_fallthru
      _
    // Predicated region
    $region30: #{_fused_forward.1} parent=1 // pred_check
      _
    $region31: #{_fused_forward.1} parent=1 // pred_check_branch
      %40 = sbr.rel (0) target = $region33
    $region32: #{_fused_forward.1} parent=1 // pred_region
      _
    $region33: #{_fused_forward.1} parent=1 // pred_fallthru
      _
    // Predicated region
    $region34: #{_fused_forward.1} parent=1 // pred_check
      _
    $region35: #{_fused_forward.1} parent=1 // pred_check_branch
      %42 = sbr.rel (0) target = $region37
    $region36: #{_fused_forward.1} parent=1 // pred_region
      %44 = vsyncadd [#allocation5], 0
      %s45 = sshll.u32 %s8, 4
      %s46 = int_to_ptr.hbm [resolvable:$true] %s45
      %s47 = sshll.u32 [#allocation4], 4
      %s48 = int_to_ptr.vmem [resolvable:$true] %s47
      %53 = dma.hbm_to_vmem [thread:$0]  %s46, 1024, %s48, [#allocation5], 64, 64, 4
    $region37: #{_fused_forward.1} parent=1 // pred_fallthru
      _
    // Predicated region
    $region38: #{_fused_forward.1} parent=1 // pred_check
      _
    $region39: #{_fused_forward.1} parent=1 // pred_check_branch
      %55 = sbr.rel (0) target = $region41
    $region40: #{_fused_forward.1} parent=1 // pred_region
      _
    $region41: #{_fused_forward.1} parent=1 // pred_fallthru
      _
    // Predicated region
    $region42: #{_fused_forward.1} parent=1 // pred_check
      _
    $region43: #{_fused_forward.1} parent=1 // pred_check_branch
      %57 = sbr.rel (0) target = $region45
    $region44: #{_fused_forward.1} parent=1 // pred_region
      %59 = vsyncadd [#allocation8], 0
      %s60 = sshll.u32 %s10, 4
      %s61 = int_to_ptr.hbm [resolvable:$true] %s60
      %s62 = sshll.u32 [#allocation7], 4
      %s63 = int_to_ptr.vmem [resolvable:$true] %s62
      %68 = dma.hbm_to_vmem [thread:$0]  %s61, 1024, %s63, [#allocation8], 64, 64, 4
    $region45: #{_fused_forward.1} parent=1 // pred_fallthru
      _
    // Predicated region
    $region46: #{_fused_forward.1} parent=1 // pred_check
      _
    $region47: #{_fused_forward.1} parent=1 // pred_check_branch
      %70 = sbr.rel (0) target = $region49
    $region48: #{_fused_forward.1} parent=1 // pred_region
      %72 = vsyncadd [#allocation8], 0
      %s73 = sshll.u32 %s11, 4
      %s74 = int_to_ptr.hbm [resolvable:$true] %s73
      %s75 = sshll.u32 [#allocation9], 4
      %s76 = int_to_ptr.vmem [resolvable:$true] %s75
      %81 = dma.hbm_to_vmem [thread:$0]  %s74, 1024, %s76, [#allocation8], 64, 64, 4
    $region49: #{_fused_forward.1} parent=1 // pred_fallthru
      _
    // Predicated region
    $region50: #{_fused_forward.1} parent=1 // pred_check
      _
    $region51: #{_fused_forward.1} parent=1 // pred_check_branch
      %83 = sbr.rel (0) target = $region53
    $region52: #{_fused_forward.1} parent=1 // pred_region
      _
    $region53: #{_fused_forward.1} parent=1 // pred_fallthru
      _
    // Predicated region
    $region54: #{_fused_forward.1} parent=1 // pred_check
      _
    $region55: #{_fused_forward.1} parent=1 // pred_check_branch
      %85 = sbr.rel (0) target = $region57
    $region56: #{_fused_forward.1} parent=1 // pred_region
      %87 = vsyncadd [#allocation11], 0
      %s88 = sshll.u32 %s13, 4
      %s89 = int_to_ptr.hbm [resolvable:$true] %s88
      %s90 = sshll.u32 [#allocation10], 4
      %s91 = int_to_ptr.vmem [resolvable:$true] %s90
      %96 = dma.hbm_to_vmem [thread:$0]  %s89, 1024, %s91, [#allocation11], 64, 64, 4
    $region57: #{_fused_forward.1} parent=1 // pred_fallthru
      _
    // Predicated region
    $region58: #{_fused_forward.1} parent=1 // pred_check
      _
    $region59: #{_fused_forward.1} parent=1 // pred_check_branch
      %98 = sbr.rel (0) target = $region61
    $region60: #{_fused_forward.1} parent=1 // pred_region
      %100 = vsyncadd [#allocation11], 0
      %s101 = sshll.u32 %s14, 4
      %s102 = int_to_ptr.hbm [resolvable:$true] %s101
      %s103 = sshll.u32 [#allocation12], 4
      %s104 = int_to_ptr.vmem [resolvable:$true] %s103
      %109 = dma.hbm_to_vmem [thread:$0]  %s102, 1024, %s104, [#allocation11], 64, 64, 4
    $region61: #{_fused_forward.1} parent=1 // pred_fallthru
      _
    // Predicated region
    $region62: #{_fused_forward.1} parent=1 // pred_check
      _
    $region63: #{_fused_forward.1} parent=1 // pred_check_branch
      %111 = sbr.rel (0) target = $region65
    $region64: #{_fused_forward.1} parent=1 // pred_region
      _
    $region65: #{_fused_forward.1} parent=1 // pred_fallthru
      _
    // Predicated region
    $region66: #{_fused_forward.1} parent=1 // pred_check
      _
    $region67: #{_fused_forward.1} parent=1 // pred_check_branch
      %113 = sbr.rel (0) target = $region69
    $region68: #{_fused_forward.1} parent=1 // pred_region
      %115 = dma.done [#allocation5], 1024
    $region69: #{_fused_forward.1} parent=1 // pred_fallthru
      _
    // Predicated region
    $region70: #{_fused_forward.1} parent=1 // pred_check
      _
    $region71: #{_fused_forward.1} parent=1 // pred_check_branch
      %117 = sbr.rel (0) target = $region73
    $region72: #{_fused_forward.1} parent=1 // pred_region
      %119 = dma.done [#allocation8], 1024
    $region73: #{_fused_forward.1} parent=1 // pred_fallthru
      _
    // Predicated region
    $region74: #{_fused_forward.1} parent=1 // pred_check
      _
    $region75: #{_fused_forward.1} parent=1 // pred_check_branch
      %121 = sbr.rel (0) target = $region77
    $region76: #{_fused_forward.1} parent=1 // pred_region
      %123 = dma.done [#allocation8], 1024
    $region77: #{_fused_forward.1} parent=1 // pred_fallthru
      _
    // Predicated region
    $region78: #{_fused_forward.1} parent=1 // pred_check
      _
    $region79: #{_fused_forward.1} parent=1 // pred_check_branch
      %125 = sbr.rel (0) target = $region81
    $region80: #{_fused_forward.1} parent=1 // pred_region
      %127 = dma.done [#allocation11], 1024
    $region81: #{_fused_forward.1} parent=1 // pred_fallthru
      _
    // Predicated region
    $region82: #{_fused_forward.1} parent=1 // pred_check
      _
    $region83: #{_fused_forward.1} parent=1 // pred_check_branch
      %129 = sbr.rel (0) target = $region85
    $region84: #{_fused_forward.1} parent=1 // pred_region
      %131 = dma.done [#allocation11], 1024
    $region85: #{_fused_forward.1} parent=1 // pred_fallthru
      _
    %v132 = vld [vmem:[%s6] sm:$0xf]
    %v133 = vld [vmem:[%s6 + $0x4] sm:$0xf]
    %v134 = vld [vmem:[%s6 + $0x8] sm:$0xf]
    %v135 = vld [vmem:[%s6 + $0xc] sm:$0xf]
    %v136 = vld [vmem:[%s6 + $0x10] sm:$0xf]
    %v137 = vld [vmem:[%s6 + $0x14] sm:$0xf]
    %v138 = vld [vmem:[%s6 + $0x18] sm:$0xf]
    %v139 = vld [vmem:[%s6 + $0x1c] sm:$0xf]
    %v140 = vld [vmem:[%s6 + $0x20] sm:$0xf]
    %v141 = vld [vmem:[%s6 + $0x24] sm:$0xf]
    %v142 = vld [vmem:[%s6 + $0x28] sm:$0xf]
    %v143 = vld [vmem:[%s6 + $0x2c] sm:$0xf]
    %v144 = vld [vmem:[%s6 + $0x30] sm:$0xf]
    %v145 = vld [vmem:[%s6 + $0x34] sm:$0xf]
    %v146 = vld [vmem:[%s6 + $0x38] sm:$0xf]
    %v147 = vld [vmem:[%s6 + $0x3c] sm:$0xf]
    %v148 = vld [vmem:[%s0] sm:$0xf]
    %v149 = vld [vmem:[%s0 + $0x4] sm:$0xf]
    %v150 = vld [vmem:[%s0 + $0x8] sm:$0xf]
    %v151 = vld [vmem:[%s0 + $0xc] sm:$0xf]
    %v152 = vld [vmem:[%s0 + $0x10] sm:$0xf]
    %v153 = vld [vmem:[%s0 + $0x14] sm:$0xf]
    %v154 = vld [vmem:[%s0 + $0x18] sm:$0xf]
    %v155 = vld [vmem:[%s0 + $0x1c] sm:$0xf]
    %v156 = vld [vmem:[%s0 + $0x20] sm:$0xf]
    %v157 = vld [vmem:[%s0 + $0x24] sm:$0xf]
    %v158 = vld [vmem:[%s0 + $0x28] sm:$0xf]
    %v159 = vld [vmem:[%s0 + $0x2c] sm:$0xf]
    %v160 = vld [vmem:[%s0 + $0x30] sm:$0xf]
    %v161 = vld [vmem:[%s0 + $0x34] sm:$0xf]
    %v162 = vld [vmem:[%s0 + $0x38] sm:$0xf]
    %v163 = vld [vmem:[%s0 + $0x3c] sm:$0xf]
    %v180 = vunpack.c.l.b16 %v148
    %v181 = vunpack.c.l.b16 %v149
    %v182 = vunpack.c.l.b16 %v150
    %v183 = vunpack.c.l.b16 %v151
    %v184 = vunpack.c.l.b16 %v152
    %v185 = vunpack.c.l.b16 %v153
    %v186 = vunpack.c.l.b16 %v154
    %v187 = vunpack.c.l.b16 %v155
    %v188 = vunpack.c.l.b16 %v156
    %v189 = vunpack.c.l.b16 %v157
    %v190 = vunpack.c.l.b16 %v158
    %v191 = vunpack.c.l.b16 %v159
    %v192 = vunpack.c.l.b16 %v160
    %v193 = vunpack.c.l.b16 %v161
    %v194 = vunpack.c.l.b16 %v162
    %v195 = vunpack.c.l.b16 %v163
    %v196 = vpack.c.b16 %v181, %v180
    %v197 = vpack.c.b16 %v183, %v182
    %v198 = vpack.c.b16 %v185, %v184
    %v199 = vpack.c.b16 %v187, %v186
    %v200 = vpack.c.b16 %v189, %v188
    %v201 = vpack.c.b16 %v191, %v190
    %v202 = vpack.c.b16 %v193, %v192
    %v203 = vpack.c.b16 %v195, %v194
    %v228 = vunpack.c.l.b16 %v132
    %v229 = vunpack.c.l.b16 %v133
    %v230 = vunpack.c.l.b16 %v134
    %v231 = vunpack.c.l.b16 %v135
    %v232 = vunpack.c.l.b16 %v136
    %v233 = vunpack.c.l.b16 %v137
    %v234 = vunpack.c.l.b16 %v138
    %v235 = vunpack.c.l.b16 %v139
    %v236 = vunpack.c.l.b16 %v140
    %v237 = vunpack.c.l.b16 %v141
    %v238 = vunpack.c.l.b16 %v142
    %v239 = vunpack.c.l.b16 %v143
    %v240 = vunpack.c.l.b16 %v144
    %v241 = vunpack.c.l.b16 %v145
    %v242 = vunpack.c.l.b16 %v146
    %v243 = vunpack.c.l.b16 %v147
    %v244 = vpack.c.b16 %v229, %v228
    %v245 = vpack.c.b16 %v231, %v230
    %v246 = vpack.c.b16 %v233, %v232
    %v247 = vpack.c.b16 %v235, %v234
    %v248 = vpack.c.b16 %v237, %v236
    %v249 = vpack.c.b16 %v239, %v238
    %v250 = vpack.c.b16 %v241, %v240
    %v251 = vpack.c.b16 %v243, %v242
    %260 = vmatpush.bf16.msra.mxu0 %v251
    %261 = vmatpush.bf16.msra.mxu0 %v250
    %262 = vmatpush.bf16.msra.mxu0 %v249
    %263 = vmatpush.bf16.msra.mxu0 %v248
    %264 = vmatpush.bf16.msra.mxu0 %v247
    %265 = vmatpush.bf16.msra.mxu0 %v246
    %266 = vmatpush.bf16.msra.mxu0 %v245
    %267 = vmatpush.bf16.msra.mxu0 %v244
    %268 = vmatmul.bf16.gmra.mxu0 %v196
    %v269 = vpop.f32.mrf.mxu0
    %v270 = vadd.f32 0.0, %v269
    %v271 = vpop.f32.mrf.mxu0
    %v272 = vadd.f32 0.0, %v271
    %273 = vmatmul.bf16.gmra.mxu0 %v197
    %v274 = vpop.f32.mrf.mxu0
    %v275 = vadd.f32 0.0, %v274
    %v276 = vpop.f32.mrf.mxu0
    %v277 = vadd.f32 0.0, %v276
    %278 = vmatmul.bf16.gmra.mxu0 %v198
    %v279 = vpop.f32.mrf.mxu0
    %v280 = vadd.f32 0.0, %v279
    %v281 = vpop.f32.mrf.mxu0
    %v282 = vadd.f32 0.0, %v281
    %283 = vmatmul.bf16.gmra.mxu0 %v199
    %v284 = vpop.f32.mrf.mxu0
    %v285 = vadd.f32 0.0, %v284
    %v286 = vpop.f32.mrf.mxu0
    %v287 = vadd.f32 0.0, %v286
    %288 = vmatmul.bf16.gmra.mxu0 %v200
    %v289 = vpop.f32.mrf.mxu0
    %v290 = vadd.f32 0.0, %v289
    %v291 = vpop.f32.mrf.mxu0
    %v292 = vadd.f32 0.0, %v291
    %293 = vmatmul.bf16.gmra.mxu0 %v201
    %v294 = vpop.f32.mrf.mxu0
    %v295 = vadd.f32 0.0, %v294
    %v296 = vpop.f32.mrf.mxu0
    %v297 = vadd.f32 0.0, %v296
    %298 = vmatmul.bf16.gmra.mxu0 %v202
    %v299 = vpop.f32.mrf.mxu0
    %v300 = vadd.f32 0.0, %v299
    %v301 = vpop.f32.mrf.mxu0
    %v302 = vadd.f32 0.0, %v301
    %303 = vmatmul.bf16.gmra.mxu0 %v203
    %v304 = vpop.f32.mrf.mxu0
    %v305 = vadd.f32 0.0, %v304
    %v306 = vpop.f32.mrf.mxu0
    %v307 = vadd.f32 0.0, %v306
    %308 = vdwg.mxu0
    %v309 = vld [vmem:[%s1] sm:$0xff]
    %v310 = vld [vmem:[%s1 + $0x8] sm:$0xff]
    %v311 = vld [vmem:[%s1 + $0x10] sm:$0xff]
    %v312 = vld [vmem:[%s1 + $0x18] sm:$0xff]
    %v313 = vld [vmem:[%s1 + $0x20] sm:$0xff]
    %v314 = vld [vmem:[%s1 + $0x28] sm:$0xff]
    %v315 = vld [vmem:[%s1 + $0x30] sm:$0xff]
    %v316 = vld [vmem:[%s1 + $0x38] sm:$0xff]
    %v317 = vld [vmem:[%s1 + $0x40] sm:$0xff]
    %v318 = vld [vmem:[%s1 + $0x48] sm:$0xff]
    %v319 = vld [vmem:[%s1 + $0x50] sm:$0xff]
    %v320 = vld [vmem:[%s1 + $0x58] sm:$0xff]
    %v321 = vld [vmem:[%s1 + $0x60] sm:$0xff]
    %v322 = vld [vmem:[%s1 + $0x68] sm:$0xff]
    %v323 = vld [vmem:[%s1 + $0x70] sm:$0xff]
    %v324 = vld [vmem:[%s1 + $0x78] sm:$0xff]
    %326 = vset.pattern.permute.xlu0 0
    %327 = vperm.xlu0 %326, %v309
    %v328 = vpop.permute.xlu0 %327
    %331 = vset.pattern.permute.xlu0 0
    %332 = vperm.xlu0 %331, %v310
    %v333 = vpop.permute.xlu0 %332
    %336 = vset.pattern.permute.xlu0 0
    %337 = vperm.xlu0 %336, %v311
    %v338 = vpop.permute.xlu0 %337
    %341 = vset.pattern.permute.xlu0 0
    %342 = vperm.xlu0 %341, %v312
    %v343 = vpop.permute.xlu0 %342
    %346 = vset.pattern.permute.xlu0 0
    %347 = vperm.xlu0 %346, %v313
    %v348 = vpop.permute.xlu0 %347
    %351 = vset.pattern.permute.xlu0 0
    %352 = vperm.xlu0 %351, %v314
    %v353 = vpop.permute.xlu0 %352
    %356 = vset.pattern.permute.xlu0 0
    %357 = vperm.xlu0 %356, %v315
    %v358 = vpop.permute.xlu0 %357
    %361 = vset.pattern.permute.xlu0 0
    %362 = vperm.xlu0 %361, %v316
    %v363 = vpop.permute.xlu0 %362
    %366 = vset.pattern.permute.xlu0 0
    %367 = vperm.xlu0 %366, %v317
    %v368 = vpop.permute.xlu0 %367
    %371 = vset.pattern.permute.xlu0 0
    %372 = vperm.xlu0 %371, %v318
    %v373 = vpop.permute.xlu0 %372
    %376 = vset.pattern.permute.xlu0 0
    %377 = vperm.xlu0 %376, %v319
    %v378 = vpop.permute.xlu0 %377
    %381 = vset.pattern.permute.xlu0 0
    %382 = vperm.xlu0 %381, %v320
    %v383 = vpop.permute.xlu0 %382
    %386 = vset.pattern.permute.xlu0 0
    %387 = vperm.xlu0 %386, %v321
    %v388 = vpop.permute.xlu0 %387
    %391 = vset.pattern.permute.xlu0 0
    %392 = vperm.xlu0 %391, %v322
    %v393 = vpop.permute.xlu0 %392
    %396 = vset.pattern.permute.xlu0 0
    %397 = vperm.xlu0 %396, %v323
    %v398 = vpop.permute.xlu0 %397
    %401 = vset.pattern.permute.xlu0 0
    %402 = vperm.xlu0 %401, %v324
    %v403 = vpop.permute.xlu0 %402
    %v405 = vmul.f32 %v270, %v328
    %v406 = vmul.f32 %v272, %v333
    %v407 = vmul.f32 %v275, %v338
    %v408 = vmul.f32 %v277, %v343
    %v409 = vmul.f32 %v280, %v348
    %v410 = vmul.f32 %v282, %v353
    %v411 = vmul.f32 %v285, %v358
    %v412 = vmul.f32 %v287, %v363
    %v413 = vmul.f32 %v290, %v368
    %v414 = vmul.f32 %v292, %v373
    %v415 = vmul.f32 %v295, %v378
    %v416 = vmul.f32 %v297, %v383
    %v417 = vmul.f32 %v300, %v388
    %v418 = vmul.f32 %v302, %v393
    %v419 = vmul.f32 %v305, %v398
    %v420 = vmul.f32 %v307, %v403
    %v421 = vld [vmem:[%s7] sm:$0xf]
    %v422 = vld [vmem:[%s7 + $0x4] sm:$0xf]
    %v423 = vld [vmem:[%s7 + $0x8] sm:$0xf]
    %v424 = vld [vmem:[%s7 + $0xc] sm:$0xf]
    %v425 = vld [vmem:[%s7 + $0x10] sm:$0xf]
    %v426 = vld [vmem:[%s7 + $0x14] sm:$0xf]
    %v427 = vld [vmem:[%s7 + $0x18] sm:$0xf]
    %v428 = vld [vmem:[%s7 + $0x1c] sm:$0xf]
    %v429 = vld [vmem:[%s7 + $0x20] sm:$0xf]
    %v430 = vld [vmem:[%s7 + $0x24] sm:$0xf]
    %v431 = vld [vmem:[%s7 + $0x28] sm:$0xf]
    %v432 = vld [vmem:[%s7 + $0x2c] sm:$0xf]
    %v433 = vld [vmem:[%s7 + $0x30] sm:$0xf]
    %v434 = vld [vmem:[%s7 + $0x34] sm:$0xf]
    %v435 = vld [vmem:[%s7 + $0x38] sm:$0xf]
    %v436 = vld [vmem:[%s7 + $0x3c] sm:$0xf]
    %v437 = vpack.c.bf16 %v406, %v405
    %v438 = vpack.c.bf16 %v408, %v407
    %v439 = vpack.c.bf16 %v410, %v409
    %v440 = vpack.c.bf16 %v412, %v411
    %v441 = vpack.c.bf16 %v414, %v413
    %v442 = vpack.c.bf16 %v416, %v415
    %v443 = vpack.c.bf16 %v418, %v417
    %v444 = vpack.c.bf16 %v420, %v419
    %v445 = vld [vmem:[#allocation4] sm:$0xf]
    %v446 = vld [vmem:[#allocation4 + $0x4] sm:$0xf]
    %v447 = vld [vmem:[#allocation4 + $0x8] sm:$0xf]
    %v448 = vld [vmem:[#allocation4 + $0xc] sm:$0xf]
    %v449 = vld [vmem:[#allocation4 + $0x10] sm:$0xf]
    %v450 = vld [vmem:[#allocation4 + $0x14] sm:$0xf]
    %v451 = vld [vmem:[#allocation4 + $0x18] sm:$0xf]
    %v452 = vld [vmem:[#allocation4 + $0x1c] sm:$0xf]
    %v453 = vld [vmem:[#allocation4 + $0x20] sm:$0xf]
    %v454 = vld [vmem:[#allocation4 + $0x24] sm:$0xf]
    %v455 = vld [vmem:[#allocation4 + $0x28] sm:$0xf]
    %v456 = vld [vmem:[#allocation4 + $0x2c] sm:$0xf]
    %v457 = vld [vmem:[#allocation4 + $0x30] sm:$0xf]
    %v458 = vld [vmem:[#allocation4 + $0x34] sm:$0xf]
    %v459 = vld [vmem:[#allocation4 + $0x38] sm:$0xf]
    %v460 = vld [vmem:[#allocation4 + $0x3c] sm:$0xf]
    %v477 = vunpack.c.l.b16 %v445
    %v478 = vunpack.c.l.b16 %v446
    %v479 = vunpack.c.l.b16 %v447
    %v480 = vunpack.c.l.b16 %v448
    %v481 = vunpack.c.l.b16 %v449
    %v482 = vunpack.c.l.b16 %v450
    %v483 = vunpack.c.l.b16 %v451
    %v484 = vunpack.c.l.b16 %v452
    %v485 = vunpack.c.l.b16 %v453
    %v486 = vunpack.c.l.b16 %v454
    %v487 = vunpack.c.l.b16 %v455
    %v488 = vunpack.c.l.b16 %v456
    %v489 = vunpack.c.l.b16 %v457
    %v490 = vunpack.c.l.b16 %v458
    %v491 = vunpack.c.l.b16 %v459
    %v492 = vunpack.c.l.b16 %v460
    %v493 = vpack.c.b16 %v478, %v477
    %v494 = vpack.c.b16 %v480, %v479
    %v495 = vpack.c.b16 %v482, %v481
    %v496 = vpack.c.b16 %v484, %v483
    %v497 = vpack.c.b16 %v486, %v485
    %v498 = vpack.c.b16 %v488, %v487
    %v499 = vpack.c.b16 %v490, %v489
    %v500 = vpack.c.b16 %v492, %v491
    %509 = vmatpush.bf16.msra.mxu0 %v500
    %510 = vmatpush.bf16.msra.mxu0 %v499
    %511 = vmatpush.bf16.msra.mxu0 %v498
    %512 = vmatpush.bf16.msra.mxu0 %v497
    %513 = vmatpush.bf16.msra.mxu0 %v496
    %514 = vmatpush.bf16.msra.mxu0 %v495
    %515 = vmatpush.bf16.msra.mxu0 %v494
    %516 = vmatpush.bf16.msra.mxu0 %v493
    %517 = vmatmul.bf16.gmra.mxu0 %v437
    %v518 = vpop.f32.mrf.mxu0
    %v519 = vadd.f32 0.0, %v518
    %v520 = vpop.f32.mrf.mxu0
    %v521 = vadd.f32 0.0, %v520
    %522 = vmatmul.bf16.gmra.mxu0 %v438
    %v523 = vpop.f32.mrf.mxu0
    %v524 = vadd.f32 0.0, %v523
    %v525 = vpop.f32.mrf.mxu0
    %v526 = vadd.f32 0.0, %v525
    %527 = vmatmul.bf16.gmra.mxu0 %v439
    %v528 = vpop.f32.mrf.mxu0
    %v529 = vadd.f32 0.0, %v528
    %v530 = vpop.f32.mrf.mxu0
    %v531 = vadd.f32 0.0, %v530
    %532 = vmatmul.bf16.gmra.mxu0 %v440
    %v533 = vpop.f32.mrf.mxu0
    %v534 = vadd.f32 0.0, %v533
    %v535 = vpop.f32.mrf.mxu0
    %v536 = vadd.f32 0.0, %v535
    %537 = vmatmul.bf16.gmra.mxu0 %v441
    %v538 = vpop.f32.mrf.mxu0
    %v539 = vadd.f32 0.0, %v538
    %v540 = vpop.f32.mrf.mxu0
    %v541 = vadd.f32 0.0, %v540
    %542 = vmatmul.bf16.gmra.mxu0 %v442
    %v543 = vpop.f32.mrf.mxu0
    %v544 = vadd.f32 0.0, %v543
    %v545 = vpop.f32.mrf.mxu0
    %v546 = vadd.f32 0.0, %v545
    %547 = vmatmul.bf16.gmra.mxu0 %v443
    %v548 = vpop.f32.mrf.mxu0
    %v549 = vadd.f32 0.0, %v548
    %v550 = vpop.f32.mrf.mxu0
    %v551 = vadd.f32 0.0, %v550
    %552 = vmatmul.bf16.gmra.mxu0 %v444
    %v553 = vpop.f32.mrf.mxu0
    %v554 = vadd.f32 0.0, %v553
    %v555 = vpop.f32.mrf.mxu0
    %v556 = vadd.f32 0.0, %v555
    %557 = vdwg.mxu0
    %v574 = vunpack.c.l.b16 %v421
    %v575 = vunpack.c.l.b16 %v422
    %v576 = vunpack.c.l.b16 %v423
    %v577 = vunpack.c.l.b16 %v424
    %v578 = vunpack.c.l.b16 %v425
    %v579 = vunpack.c.l.b16 %v426
    %v580 = vunpack.c.l.b16 %v427
    %v581 = vunpack.c.l.b16 %v428
    %v582 = vunpack.c.l.b16 %v429
    %v583 = vunpack.c.l.b16 %v430
    %v584 = vunpack.c.l.b16 %v431
    %v585 = vunpack.c.l.b16 %v432
    %v586 = vunpack.c.l.b16 %v433
    %v587 = vunpack.c.l.b16 %v434
    %v588 = vunpack.c.l.b16 %v435
    %v589 = vunpack.c.l.b16 %v436
    %v590 = vpack.c.b16 %v575, %v574
    %v591 = vpack.c.b16 %v577, %v576
    %v592 = vpack.c.b16 %v579, %v578
    %v593 = vpack.c.b16 %v581, %v580
    %v594 = vpack.c.b16 %v583, %v582
    %v595 = vpack.c.b16 %v585, %v584
    %v596 = vpack.c.b16 %v587, %v586
    %v597 = vpack.c.b16 %v589, %v588
    %606 = vmatpush.bf16.msra.mxu0 %v597
    %607 = vmatpush.bf16.msra.mxu0 %v596
    %608 = vmatpush.bf16.msra.mxu0 %v595
    %609 = vmatpush.bf16.msra.mxu0 %v594
    %610 = vmatpush.bf16.msra.mxu0 %v593
    %611 = vmatpush.bf16.msra.mxu0 %v592
    %612 = vmatpush.bf16.msra.mxu0 %v591
    %613 = vmatpush.bf16.msra.mxu0 %v590
    %614 = vmatmul.bf16.gmra.mxu0 %v244
    %v615 = vpop.f32.mrf.mxu0
    %v616 = vadd.f32 %v519, %v615
    %v617 = vpop.f32.mrf.mxu0
    %v618 = vadd.f32 %v521, %v617
    %619 = vmatmul.bf16.gmra.mxu0 %v245
    %v620 = vpop.f32.mrf.mxu0
    %v621 = vadd.f32 %v524, %v620
    %v622 = vpop.f32.mrf.mxu0
    %v623 = vadd.f32 %v526, %v622
    %624 = vmatmul.bf16.gmra.mxu0 %v246
    %v625 = vpop.f32.mrf.mxu0
    %v626 = vadd.f32 %v529, %v625
    %v627 = vpop.f32.mrf.mxu0
    %v628 = vadd.f32 %v531, %v627
    %629 = vmatmul.bf16.gmra.mxu0 %v247
    %v630 = vpop.f32.mrf.mxu0
    %v631 = vadd.f32 %v534, %v630
    %v632 = vpop.f32.mrf.mxu0
    %v633 = vadd.f32 %v536, %v632
    %634 = vmatmul.bf16.gmra.mxu0 %v248
    %v635 = vpop.f32.mrf.mxu0
    %v636 = vadd.f32 %v539, %v635
    %v637 = vpop.f32.mrf.mxu0
    %v638 = vadd.f32 %v541, %v637
    %639 = vmatmul.bf16.gmra.mxu0 %v249
    %v640 = vpop.f32.mrf.mxu0
    %v641 = vadd.f32 %v544, %v640
    %v642 = vpop.f32.mrf.mxu0
    %v643 = vadd.f32 %v546, %v642
    %644 = vmatmul.bf16.gmra.mxu0 %v250
    %v645 = vpop.f32.mrf.mxu0
    %v646 = vadd.f32 %v549, %v645
    %v647 = vpop.f32.mrf.mxu0
    %v648 = vadd.f32 %v551, %v647
    %649 = vmatmul.bf16.gmra.mxu0 %v251
    %v650 = vpop.f32.mrf.mxu0
    %v651 = vadd.f32 %v554, %v650
    %v652 = vpop.f32.mrf.mxu0
    %v653 = vadd.f32 %v556, %v652
    %654 = vdwg.mxu0
    %v655 = vld [vmem:[%s9] sm:$0x1]
    %v657 = vperm.slane %v655, 0
    %v659 = vadd.f32 %v616, %v657
    %v660 = vadd.f32 %v618, %v657
    %v661 = vadd.f32 %v621, %v657
    %v662 = vadd.f32 %v623, %v657
    %v663 = vadd.f32 %v626, %v657
    %v664 = vadd.f32 %v628, %v657
    %v665 = vadd.f32 %v631, %v657
    %v666 = vadd.f32 %v633, %v657
    %v667 = vadd.f32 %v636, %v657
    %v668 = vadd.f32 %v638, %v657
    %v669 = vadd.f32 %v641, %v657
    %v670 = vadd.f32 %v643, %v657
    %v671 = vadd.f32 %v646, %v657
    %v672 = vadd.f32 %v648, %v657
    %v673 = vadd.f32 %v651, %v657
    %v674 = vadd.f32 %v653, %v657
    %v675 = vmax.f32 %v659, 0.0
    %v676 = vmax.f32 %v660, 0.0
    %v677 = vmax.f32 %v661, 0.0
    %v678 = vmax.f32 %v662, 0.0
    %v679 = vmax.f32 %v663, 0.0
    %v680 = vmax.f32 %v664, 0.0
    %v681 = vmax.f32 %v665, 0.0
    %v682 = vmax.f32 %v666, 0.0
    %v683 = vmax.f32 %v667, 0.0
    %v684 = vmax.f32 %v668, 0.0
    %v685 = vmax.f32 %v669, 0.0
    %v686 = vmax.f32 %v670, 0.0
    %v687 = vmax.f32 %v671, 0.0
    %v688 = vmax.f32 %v672, 0.0
    %v689 = vmax.f32 %v673, 0.0
    %v690 = vmax.f32 %v674, 0.0
    %v691 = vpack.c.bf16 %v675, %v675
    %v692 = vpack.c.bf16 %v676, %v676
    %v693 = vpack.c.bf16 %v677, %v677
    %v694 = vpack.c.bf16 %v678, %v678
    %v695 = vpack.c.bf16 %v679, %v679
    %v696 = vpack.c.bf16 %v680, %v680
    %v697 = vpack.c.bf16 %v681, %v681
    %v698 = vpack.c.bf16 %v682, %v682
    %v699 = vpack.c.bf16 %v683, %v683
    %v700 = vpack.c.bf16 %v684, %v684
    %v701 = vpack.c.bf16 %v685, %v685
    %v702 = vpack.c.bf16 %v686, %v686
    %v703 = vpack.c.bf16 %v687, %v687
    %v704 = vpack.c.bf16 %v688, %v688
    %v705 = vpack.c.bf16 %v689, %v689
    %v706 = vpack.c.bf16 %v690, %v690
    %707 = vst [vmem:[#allocation2] sm:$0xf] %v691
    %708 = vst [vmem:[#allocation2 + $0x4] sm:$0xf] %v692
    %709 = vst [vmem:[#allocation2 + $0x8] sm:$0xf] %v693
    %710 = vst [vmem:[#allocation2 + $0xc] sm:$0xf] %v694
    %711 = vst [vmem:[#allocation2 + $0x10] sm:$0xf] %v695
    %712 = vst [vmem:[#allocation2 + $0x14] sm:$0xf] %v696
    %713 = vst [vmem:[#allocation2 + $0x18] sm:$0xf] %v697
    %714 = vst [vmem:[#allocation2 + $0x1c] sm:$0xf] %v698
    %715 = vst [vmem:[#allocation2 + $0x20] sm:$0xf] %v699
    %716 = vst [vmem:[#allocation2 + $0x24] sm:$0xf] %v700
    %717 = vst [vmem:[#allocation2 + $0x28] sm:$0xf] %v701
    %718 = vst [vmem:[#allocation2 + $0x2c] sm:$0xf] %v702
    %719 = vst [vmem:[#allocation2 + $0x30] sm:$0xf] %v703
    %720 = vst [vmem:[#allocation2 + $0x34] sm:$0xf] %v704
    %721 = vst [vmem:[#allocation2 + $0x38] sm:$0xf] %v705
    %722 = vst [vmem:[#allocation2 + $0x3c] sm:$0xf] %v706
    %v723 = vld [vmem:[#allocation2] sm:$0xf]
    %v724 = vld [vmem:[#allocation2 + $0x4] sm:$0xf]
    %v725 = vld [vmem:[#allocation2 + $0x8] sm:$0xf]
    %v726 = vld [vmem:[#allocation2 + $0xc] sm:$0xf]
    %v727 = vld [vmem:[#allocation2 + $0x10] sm:$0xf]
    %v728 = vld [vmem:[#allocation2 + $0x14] sm:$0xf]
    %v729 = vld [vmem:[#allocation2 + $0x18] sm:$0xf]
    %v730 = vld [vmem:[#allocation2 + $0x1c] sm:$0xf]
    %v731 = vld [vmem:[#allocation2 + $0x20] sm:$0xf]
    %v732 = vld [vmem:[#allocation2 + $0x24] sm:$0xf]
    %v733 = vld [vmem:[#allocation2 + $0x28] sm:$0xf]
    %v734 = vld [vmem:[#allocation2 + $0x2c] sm:$0xf]
    %v735 = vld [vmem:[#allocation2 + $0x30] sm:$0xf]
    %v736 = vld [vmem:[#allocation2 + $0x34] sm:$0xf]
    %v737 = vld [vmem:[#allocation2 + $0x38] sm:$0xf]
    %v738 = vld [vmem:[#allocation2 + $0x3c] sm:$0xf]
    %v739 = vld [vmem:[%s2] sm:$0xf]
    %v740 = vld [vmem:[%s2 + $0x4] sm:$0xf]
    %v741 = vld [vmem:[%s2 + $0x8] sm:$0xf]
    %v742 = vld [vmem:[%s2 + $0xc] sm:$0xf]
    %v743 = vld [vmem:[%s2 + $0x10] sm:$0xf]
    %v744 = vld [vmem:[%s2 + $0x14] sm:$0xf]
    %v745 = vld [vmem:[%s2 + $0x18] sm:$0xf]
    %v746 = vld [vmem:[%s2 + $0x1c] sm:$0xf]
    %v747 = vld [vmem:[%s2 + $0x20] sm:$0xf]
    %v748 = vld [vmem:[%s2 + $0x24] sm:$0xf]
    %v749 = vld [vmem:[%s2 + $0x28] sm:$0xf]
    %v750 = vld [vmem:[%s2 + $0x2c] sm:$0xf]
    %v751 = vld [vmem:[%s2 + $0x30] sm:$0xf]
    %v752 = vld [vmem:[%s2 + $0x34] sm:$0xf]
    %v753 = vld [vmem:[%s2 + $0x38] sm:$0xf]
    %v754 = vld [vmem:[%s2 + $0x3c] sm:$0xf]
    %v771 = vunpack.c.l.b16 %v739
    %v772 = vunpack.c.l.b16 %v740
    %v773 = vunpack.c.l.b16 %v741
    %v774 = vunpack.c.l.b16 %v742
    %v775 = vunpack.c.l.b16 %v743
    %v776 = vunpack.c.l.b16 %v744
    %v777 = vunpack.c.l.b16 %v745
    %v778 = vunpack.c.l.b16 %v746
    %v779 = vunpack.c.l.b16 %v747
    %v780 = vunpack.c.l.b16 %v748
    %v781 = vunpack.c.l.b16 %v749
    %v782 = vunpack.c.l.b16 %v750
    %v783 = vunpack.c.l.b16 %v751
    %v784 = vunpack.c.l.b16 %v752
    %v785 = vunpack.c.l.b16 %v753
    %v786 = vunpack.c.l.b16 %v754
    %v787 = vpack.c.b16 %v772, %v771
    %v788 = vpack.c.b16 %v774, %v773
    %v789 = vpack.c.b16 %v776, %v775
    %v790 = vpack.c.b16 %v778, %v777
    %v791 = vpack.c.b16 %v780, %v779
    %v792 = vpack.c.b16 %v782, %v781
    %v793 = vpack.c.b16 %v784, %v783
    %v794 = vpack.c.b16 %v786, %v785
    %v819 = vunpack.c.l.b16 %v723
    %v820 = vunpack.c.l.b16 %v724
    %v821 = vunpack.c.l.b16 %v725
    %v822 = vunpack.c.l.b16 %v726
    %v823 = vunpack.c.l.b16 %v727
    %v824 = vunpack.c.l.b16 %v728
    %v825 = vunpack.c.l.b16 %v729
    %v826 = vunpack.c.l.b16 %v730
    %v827 = vunpack.c.l.b16 %v731
    %v828 = vunpack.c.l.b16 %v732
    %v829 = vunpack.c.l.b16 %v733
    %v830 = vunpack.c.l.b16 %v734
    %v831 = vunpack.c.l.b16 %v735
    %v832 = vunpack.c.l.b16 %v736
    %v833 = vunpack.c.l.b16 %v737
    %v834 = vunpack.c.l.b16 %v738
    %v835 = vpack.c.b16 %v820, %v819
    %v836 = vpack.c.b16 %v822, %v821
    %v837 = vpack.c.b16 %v824, %v823
    %v838 = vpack.c.b16 %v826, %v825
    %v839 = vpack.c.b16 %v828, %v827
    %v840 = vpack.c.b16 %v830, %v829
    %v841 = vpack.c.b16 %v832, %v831
    %v842 = vpack.c.b16 %v834, %v833
    %851 = vmatpush.bf16.msra.mxu0 %v842
    %852 = vmatpush.bf16.msra.mxu0 %v841
    %853 = vmatpush.bf16.msra.mxu0 %v840
    %854 = vmatpush.bf16.msra.mxu0 %v839
    %855 = vmatpush.bf16.msra.mxu0 %v838
    %856 = vmatpush.bf16.msra.mxu0 %v837
    %857 = vmatpush.bf16.msra.mxu0 %v836
    %858 = vmatpush.bf16.msra.mxu0 %v835
    %859 = vmatmul.bf16.gmra.mxu0 %v787
    %v860 = vpop.f32.mrf.mxu0
    %v861 = vadd.f32 0.0, %v860
    %v862 = vpop.f32.mrf.mxu0
    %v863 = vadd.f32 0.0, %v862
    %864 = vmatmul.bf16.gmra.mxu0 %v788
    %v865 = vpop.f32.mrf.mxu0
    %v866 = vadd.f32 0.0, %v865
    %v867 = vpop.f32.mrf.mxu0
    %v868 = vadd.f32 0.0, %v867
    %869 = vmatmul.bf16.gmra.mxu0 %v789
    %v870 = vpop.f32.mrf.mxu0
    %v871 = vadd.f32 0.0, %v870
    %v872 = vpop.f32.mrf.mxu0
    %v873 = vadd.f32 0.0, %v872
    %874 = vmatmul.bf16.gmra.mxu0 %v790
    %v875 = vpop.f32.mrf.mxu0
    %v876 = vadd.f32 0.0, %v875
    %v877 = vpop.f32.mrf.mxu0
    %v878 = vadd.f32 0.0, %v877
    %879 = vmatmul.bf16.gmra.mxu0 %v791
    %v880 = vpop.f32.mrf.mxu0
    %v881 = vadd.f32 0.0, %v880
    %v882 = vpop.f32.mrf.mxu0
    %v883 = vadd.f32 0.0, %v882
    %884 = vmatmul.bf16.gmra.mxu0 %v792
    %v885 = vpop.f32.mrf.mxu0
    %v886 = vadd.f32 0.0, %v885
    %v887 = vpop.f32.mrf.mxu0
    %v888 = vadd.f32 0.0, %v887
    %889 = vmatmul.bf16.gmra.mxu0 %v793
    %v890 = vpop.f32.mrf.mxu0
    %v891 = vadd.f32 0.0, %v890
    %v892 = vpop.f32.mrf.mxu0
    %v893 = vadd.f32 0.0, %v892
    %894 = vmatmul.bf16.gmra.mxu0 %v794
    %v895 = vpop.f32.mrf.mxu0
    %v896 = vadd.f32 0.0, %v895
    %v897 = vpop.f32.mrf.mxu0
    %v898 = vadd.f32 0.0, %v897
    %899 = vdwg.mxu0
    %v900 = vld [vmem:[%s3] sm:$0xff]
    %v901 = vld [vmem:[%s3 + $0x8] sm:$0xff]
    %v902 = vld [vmem:[%s3 + $0x10] sm:$0xff]
    %v903 = vld [vmem:[%s3 + $0x18] sm:$0xff]
    %v904 = vld [vmem:[%s3 + $0x20] sm:$0xff]
    %v905 = vld [vmem:[%s3 + $0x28] sm:$0xff]
    %v906 = vld [vmem:[%s3 + $0x30] sm:$0xff]
    %v907 = vld [vmem:[%s3 + $0x38] sm:$0xff]
    %v908 = vld [vmem:[%s3 + $0x40] sm:$0xff]
    %v909 = vld [vmem:[%s3 + $0x48] sm:$0xff]
    %v910 = vld [vmem:[%s3 + $0x50] sm:$0xff]
    %v911 = vld [vmem:[%s3 + $0x58] sm:$0xff]
    %v912 = vld [vmem:[%s3 + $0x60] sm:$0xff]
    %v913 = vld [vmem:[%s3 + $0x68] sm:$0xff]
    %v914 = vld [vmem:[%s3 + $0x70] sm:$0xff]
    %v915 = vld [vmem:[%s3 + $0x78] sm:$0xff]
    %917 = vset.pattern.permute.xlu0 0
    %918 = vperm.xlu0 %917, %v900
    %v919 = vpop.permute.xlu0 %918
    %922 = vset.pattern.permute.xlu0 0
    %923 = vperm.xlu0 %922, %v901
    %v924 = vpop.permute.xlu0 %923
    %927 = vset.pattern.permute.xlu0 0
    %928 = vperm.xlu0 %927, %v902
    %v929 = vpop.permute.xlu0 %928
    %932 = vset.pattern.permute.xlu0 0
    %933 = vperm.xlu0 %932, %v903
    %v934 = vpop.permute.xlu0 %933
    %937 = vset.pattern.permute.xlu0 0
    %938 = vperm.xlu0 %937, %v904
    %v939 = vpop.permute.xlu0 %938
    %942 = vset.pattern.permute.xlu0 0
    %943 = vperm.xlu0 %942, %v905
    %v944 = vpop.permute.xlu0 %943
    %947 = vset.pattern.permute.xlu0 0
    %948 = vperm.xlu0 %947, %v906
    %v949 = vpop.permute.xlu0 %948
    %952 = vset.pattern.permute.xlu0 0
    %953 = vperm.xlu0 %952, %v907
    %v954 = vpop.permute.xlu0 %953
    %957 = vset.pattern.permute.xlu0 0
    %958 = vperm.xlu0 %957, %v908
    %v959 = vpop.permute.xlu0 %958
    %962 = vset.pattern.permute.xlu0 0
    %963 = vperm.xlu0 %962, %v909
    %v964 = vpop.permute.xlu0 %963
    %967 = vset.pattern.permute.xlu0 0
    %968 = vperm.xlu0 %967, %v910
    %v969 = vpop.permute.xlu0 %968
    %972 = vset.pattern.permute.xlu0 0
    %973 = vperm.xlu0 %972, %v911
    %v974 = vpop.permute.xlu0 %973
    %977 = vset.pattern.permute.xlu0 0
    %978 = vperm.xlu0 %977, %v912
    %v979 = vpop.permute.xlu0 %978
    %982 = vset.pattern.permute.xlu0 0
    %983 = vperm.xlu0 %982, %v913
    %v984 = vpop.permute.xlu0 %983
    %987 = vset.pattern.permute.xlu0 0
    %988 = vperm.xlu0 %987, %v914
    %v989 = vpop.permute.xlu0 %988
    %992 = vset.pattern.permute.xlu0 0
    %993 = vperm.xlu0 %992, %v915
    %v994 = vpop.permute.xlu0 %993
    %v996 = vmul.f32 %v861, %v919
    %v997 = vmul.f32 %v863, %v924
    %v998 = vmul.f32 %v866, %v929
    %v999 = vmul.f32 %v868, %v934
    %v1000 = vmul.f32 %v871, %v939
    %v1001 = vmul.f32 %v873, %v944
    %v1002 = vmul.f32 %v876, %v949
    %v1003 = vmul.f32 %v878, %v954
    %v1004 = vmul.f32 %v881, %v959
    %v1005 = vmul.f32 %v883, %v964
    %v1006 = vmul.f32 %v886, %v969
    %v1007 = vmul.f32 %v888, %v974
    %v1008 = vmul.f32 %v891, %v979
    %v1009 = vmul.f32 %v893, %v984
    %v1010 = vmul.f32 %v896, %v989
    %v1011 = vmul.f32 %v898, %v994
    %v1012 = vld [vmem:[#allocation7] sm:$0xf]
    %v1013 = vld [vmem:[#allocation7 + $0x4] sm:$0xf]
    %v1014 = vld [vmem:[#allocation7 + $0x8] sm:$0xf]
    %v1015 = vld [vmem:[#allocation7 + $0xc] sm:$0xf]
    %v1016 = vld [vmem:[#allocation7 + $0x10] sm:$0xf]
    %v1017 = vld [vmem:[#allocation7 + $0x14] sm:$0xf]
    %v1018 = vld [vmem:[#allocation7 + $0x18] sm:$0xf]
    %v1019 = vld [vmem:[#allocation7 + $0x1c] sm:$0xf]
    %v1020 = vld [vmem:[#allocation7 + $0x20] sm:$0xf]
    %v1021 = vld [vmem:[#allocation7 + $0x24] sm:$0xf]
    %v1022 = vld [vmem:[#allocation7 + $0x28] sm:$0xf]
    %v1023 = vld [vmem:[#allocation7 + $0x2c] sm:$0xf]
    %v1024 = vld [vmem:[#allocation7 + $0x30] sm:$0xf]
    %v1025 = vld [vmem:[#allocation7 + $0x34] sm:$0xf]
    %v1026 = vld [vmem:[#allocation7 + $0x38] sm:$0xf]
    %v1027 = vld [vmem:[#allocation7 + $0x3c] sm:$0xf]
    %v1028 = vpack.c.bf16 %v997, %v996
    %v1029 = vpack.c.bf16 %v999, %v998
    %v1030 = vpack.c.bf16 %v1001, %v1000
    %v1031 = vpack.c.bf16 %v1003, %v1002
    %v1032 = vpack.c.bf16 %v1005, %v1004
    %v1033 = vpack.c.bf16 %v1007, %v1006
    %v1034 = vpack.c.bf16 %v1009, %v1008
    %v1035 = vpack.c.bf16 %v1011, %v1010
    %v1036 = vld [vmem:[#allocation9] sm:$0xf]
    %v1037 = vld [vmem:[#allocation9 + $0x4] sm:$0xf]
    %v1038 = vld [vmem:[#allocation9 + $0x8] sm:$0xf]
    %v1039 = vld [vmem:[#allocation9 + $0xc] sm:$0xf]
    %v1040 = vld [vmem:[#allocation9 + $0x10] sm:$0xf]
    %v1041 = vld [vmem:[#allocation9 + $0x14] sm:$0xf]
    %v1042 = vld [vmem:[#allocation9 + $0x18] sm:$0xf]
    %v1043 = vld [vmem:[#allocation9 + $0x1c] sm:$0xf]
    %v1044 = vld [vmem:[#allocation9 + $0x20] sm:$0xf]
    %v1045 = vld [vmem:[#allocation9 + $0x24] sm:$0xf]
    %v1046 = vld [vmem:[#allocation9 + $0x28] sm:$0xf]
    %v1047 = vld [vmem:[#allocation9 + $0x2c] sm:$0xf]
    %v1048 = vld [vmem:[#allocation9 + $0x30] sm:$0xf]
    %v1049 = vld [vmem:[#allocation9 + $0x34] sm:$0xf]
    %v1050 = vld [vmem:[#allocation9 + $0x38] sm:$0xf]
    %v1051 = vld [vmem:[#allocation9 + $0x3c] sm:$0xf]
    %v1068 = vunpack.c.l.b16 %v1036
    %v1069 = vunpack.c.l.b16 %v1037
    %v1070 = vunpack.c.l.b16 %v1038
    %v1071 = vunpack.c.l.b16 %v1039
    %v1072 = vunpack.c.l.b16 %v1040
    %v1073 = vunpack.c.l.b16 %v1041
    %v1074 = vunpack.c.l.b16 %v1042
    %v1075 = vunpack.c.l.b16 %v1043
    %v1076 = vunpack.c.l.b16 %v1044
    %v1077 = vunpack.c.l.b16 %v1045
    %v1078 = vunpack.c.l.b16 %v1046
    %v1079 = vunpack.c.l.b16 %v1047
    %v1080 = vunpack.c.l.b16 %v1048
    %v1081 = vunpack.c.l.b16 %v1049
    %v1082 = vunpack.c.l.b16 %v1050
    %v1083 = vunpack.c.l.b16 %v1051
    %v1084 = vpack.c.b16 %v1069, %v1068
    %v1085 = vpack.c.b16 %v1071, %v1070
    %v1086 = vpack.c.b16 %v1073, %v1072
    %v1087 = vpack.c.b16 %v1075, %v1074
    %v1088 = vpack.c.b16 %v1077, %v1076
    %v1089 = vpack.c.b16 %v1079, %v1078
    %v1090 = vpack.c.b16 %v1081, %v1080
    %v1091 = vpack.c.b16 %v1083, %v1082
    %1100 = vmatpush.bf16.msra.mxu0 %v1091
    %1101 = vmatpush.bf16.msra.mxu0 %v1090
    %1102 = vmatpush.bf16.msra.mxu0 %v1089
    %1103 = vmatpush.bf16.msra.mxu0 %v1088
    %1104 = vmatpush.bf16.msra.mxu0 %v1087
    %1105 = vmatpush.bf16.msra.mxu0 %v1086
    %1106 = vmatpush.bf16.msra.mxu0 %v1085
    %1107 = vmatpush.bf16.msra.mxu0 %v1084
    %1108 = vmatmul.bf16.gmra.mxu0 %v1028
    %v1109 = vpop.f32.mrf.mxu0
    %v1110 = vadd.f32 0.0, %v1109
    %v1111 = vpop.f32.mrf.mxu0
    %v1112 = vadd.f32 0.0, %v1111
    %1113 = vmatmul.bf16.gmra.mxu0 %v1029
    %v1114 = vpop.f32.mrf.mxu0
    %v1115 = vadd.f32 0.0, %v1114
    %v1116 = vpop.f32.mrf.mxu0
    %v1117 = vadd.f32 0.0, %v1116
    %1118 = vmatmul.bf16.gmra.mxu0 %v1030
    %v1119 = vpop.f32.mrf.mxu0
    %v1120 = vadd.f32 0.0, %v1119
    %v1121 = vpop.f32.mrf.mxu0
    %v1122 = vadd.f32 0.0, %v1121
    %1123 = vmatmul.bf16.gmra.mxu0 %v1031
    %v1124 = vpop.f32.mrf.mxu0
    %v1125 = vadd.f32 0.0, %v1124
    %v1126 = vpop.f32.mrf.mxu0
    %v1127 = vadd.f32 0.0, %v1126
    %1128 = vmatmul.bf16.gmra.mxu0 %v1032
    %v1129 = vpop.f32.mrf.mxu0
    %v1130 = vadd.f32 0.0, %v1129
    %v1131 = vpop.f32.mrf.mxu0
    %v1132 = vadd.f32 0.0, %v1131
    %1133 = vmatmul.bf16.gmra.mxu0 %v1033
    %v1134 = vpop.f32.mrf.mxu0
    %v1135 = vadd.f32 0.0, %v1134
    %v1136 = vpop.f32.mrf.mxu0
    %v1137 = vadd.f32 0.0, %v1136
    %1138 = vmatmul.bf16.gmra.mxu0 %v1034
    %v1139 = vpop.f32.mrf.mxu0
    %v1140 = vadd.f32 0.0, %v1139
    %v1141 = vpop.f32.mrf.mxu0
    %v1142 = vadd.f32 0.0, %v1141
    %1143 = vmatmul.bf16.gmra.mxu0 %v1035
    %v1144 = vpop.f32.mrf.mxu0
    %v1145 = vadd.f32 0.0, %v1144
    %v1146 = vpop.f32.mrf.mxu0
    %v1147 = vadd.f32 0.0, %v1146
    %1148 = vdwg.mxu0
    %v1165 = vunpack.c.l.b16 %v1012
    %v1166 = vunpack.c.l.b16 %v1013
    %v1167 = vunpack.c.l.b16 %v1014
    %v1168 = vunpack.c.l.b16 %v1015
    %v1169 = vunpack.c.l.b16 %v1016
    %v1170 = vunpack.c.l.b16 %v1017
    %v1171 = vunpack.c.l.b16 %v1018
    %v1172 = vunpack.c.l.b16 %v1019
    %v1173 = vunpack.c.l.b16 %v1020
    %v1174 = vunpack.c.l.b16 %v1021
    %v1175 = vunpack.c.l.b16 %v1022
    %v1176 = vunpack.c.l.b16 %v1023
    %v1177 = vunpack.c.l.b16 %v1024
    %v1178 = vunpack.c.l.b16 %v1025
    %v1179 = vunpack.c.l.b16 %v1026
    %v1180 = vunpack.c.l.b16 %v1027
    %v1181 = vpack.c.b16 %v1166, %v1165
    %v1182 = vpack.c.b16 %v1168, %v1167
    %v1183 = vpack.c.b16 %v1170, %v1169
    %v1184 = vpack.c.b16 %v1172, %v1171
    %v1185 = vpack.c.b16 %v1174, %v1173
    %v1186 = vpack.c.b16 %v1176, %v1175
    %v1187 = vpack.c.b16 %v1178, %v1177
    %v1188 = vpack.c.b16 %v1180, %v1179
    %1197 = vmatpush.bf16.msra.mxu0 %v1188
    %1198 = vmatpush.bf16.msra.mxu0 %v1187
    %1199 = vmatpush.bf16.msra.mxu0 %v1186
    %1200 = vmatpush.bf16.msra.mxu0 %v1185
    %1201 = vmatpush.bf16.msra.mxu0 %v1184
    %1202 = vmatpush.bf16.msra.mxu0 %v1183
    %1203 = vmatpush.bf16.msra.mxu0 %v1182
    %1204 = vmatpush.bf16.msra.mxu0 %v1181
    %1205 = vmatmul.bf16.gmra.mxu0 %v835
    %v1206 = vpop.f32.mrf.mxu0
    %v1207 = vadd.f32 %v1110, %v1206
    %v1208 = vpop.f32.mrf.mxu0
    %v1209 = vadd.f32 %v1112, %v1208
    %1210 = vmatmul.bf16.gmra.mxu0 %v836
    %v1211 = vpop.f32.mrf.mxu0
    %v1212 = vadd.f32 %v1115, %v1211
    %v1213 = vpop.f32.mrf.mxu0
    %v1214 = vadd.f32 %v1117, %v1213
    %1215 = vmatmul.bf16.gmra.mxu0 %v837
    %v1216 = vpop.f32.mrf.mxu0
    %v1217 = vadd.f32 %v1120, %v1216
    %v1218 = vpop.f32.mrf.mxu0
    %v1219 = vadd.f32 %v1122, %v1218
    %1220 = vmatmul.bf16.gmra.mxu0 %v838
    %v1221 = vpop.f32.mrf.mxu0
    %v1222 = vadd.f32 %v1125, %v1221
    %v1223 = vpop.f32.mrf.mxu0
    %v1224 = vadd.f32 %v1127, %v1223
    %1225 = vmatmul.bf16.gmra.mxu0 %v839
    %v1226 = vpop.f32.mrf.mxu0
    %v1227 = vadd.f32 %v1130, %v1226
    %v1228 = vpop.f32.mrf.mxu0
    %v1229 = vadd.f32 %v1132, %v1228
    %1230 = vmatmul.bf16.gmra.mxu0 %v840
    %v1231 = vpop.f32.mrf.mxu0
    %v1232 = vadd.f32 %v1135, %v1231
    %v1233 = vpop.f32.mrf.mxu0
    %v1234 = vadd.f32 %v1137, %v1233
    %1235 = vmatmul.bf16.gmra.mxu0 %v841
    %v1236 = vpop.f32.mrf.mxu0
    %v1237 = vadd.f32 %v1140, %v1236
    %v1238 = vpop.f32.mrf.mxu0
    %v1239 = vadd.f32 %v1142, %v1238
    %1240 = vmatmul.bf16.gmra.mxu0 %v842
    %v1241 = vpop.f32.mrf.mxu0
    %v1242 = vadd.f32 %v1145, %v1241
    %v1243 = vpop.f32.mrf.mxu0
    %v1244 = vadd.f32 %v1147, %v1243
    %1245 = vdwg.mxu0
    %v1246 = vld [vmem:[%s12] sm:$0x1]
    %v1248 = vperm.slane %v1246, 0
    %v1250 = vadd.f32 %v1207, %v1248
    %v1251 = vadd.f32 %v1209, %v1248
    %v1252 = vadd.f32 %v1212, %v1248
    %v1253 = vadd.f32 %v1214, %v1248
    %v1254 = vadd.f32 %v1217, %v1248
    %v1255 = vadd.f32 %v1219, %v1248
    %v1256 = vadd.f32 %v1222, %v1248
    %v1257 = vadd.f32 %v1224, %v1248
    %v1258 = vadd.f32 %v1227, %v1248
    %v1259 = vadd.f32 %v1229, %v1248
    %v1260 = vadd.f32 %v1232, %v1248
    %v1261 = vadd.f32 %v1234, %v1248
    %v1262 = vadd.f32 %v1237, %v1248
    %v1263 = vadd.f32 %v1239, %v1248
    %v1264 = vadd.f32 %v1242, %v1248
    %v1265 = vadd.f32 %v1244, %v1248
    %v1266 = vmax.f32 %v1250, 0.0
    %v1267 = vmax.f32 %v1251, 0.0
    %v1268 = vmax.f32 %v1252, 0.0
    %v1269 = vmax.f32 %v1253, 0.0
    %v1270 = vmax.f32 %v1254, 0.0
    %v1271 = vmax.f32 %v1255, 0.0
    %v1272 = vmax.f32 %v1256, 0.0
    %v1273 = vmax.f32 %v1257, 0.0
    %v1274 = vmax.f32 %v1258, 0.0
    %v1275 = vmax.f32 %v1259, 0.0
    %v1276 = vmax.f32 %v1260, 0.0
    %v1277 = vmax.f32 %v1261, 0.0
    %v1278 = vmax.f32 %v1262, 0.0
    %v1279 = vmax.f32 %v1263, 0.0
    %v1280 = vmax.f32 %v1264, 0.0
    %v1281 = vmax.f32 %v1265, 0.0
    %v1282 = vpack.c.bf16 %v1266, %v1266
    %v1283 = vpack.c.bf16 %v1267, %v1267
    %v1284 = vpack.c.bf16 %v1268, %v1268
    %v1285 = vpack.c.bf16 %v1269, %v1269
    %v1286 = vpack.c.bf16 %v1270, %v1270
    %v1287 = vpack.c.bf16 %v1271, %v1271
    %v1288 = vpack.c.bf16 %v1272, %v1272
    %v1289 = vpack.c.bf16 %v1273, %v1273
    %v1290 = vpack.c.bf16 %v1274, %v1274
    %v1291 = vpack.c.bf16 %v1275, %v1275
    %v1292 = vpack.c.bf16 %v1276, %v1276
    %v1293 = vpack.c.bf16 %v1277, %v1277
    %v1294 = vpack.c.bf16 %v1278, %v1278
    %v1295 = vpack.c.bf16 %v1279, %v1279
    %v1296 = vpack.c.bf16 %v1280, %v1280
    %v1297 = vpack.c.bf16 %v1281, %v1281
    %1298 = vst [vmem:[#allocation3] sm:$0xf] %v1282
    %1299 = vst [vmem:[#allocation3 + $0x4] sm:$0xf] %v1283
    %1300 = vst [vmem:[#allocation3 + $0x8] sm:$0xf] %v1284
    %1301 = vst [vmem:[#allocation3 + $0xc] sm:$0xf] %v1285
    %1302 = vst [vmem:[#allocation3 + $0x10] sm:$0xf] %v1286
    %1303 = vst [vmem:[#allocation3 + $0x14] sm:$0xf] %v1287
    %1304 = vst [vmem:[#allocation3 + $0x18] sm:$0xf] %v1288
    %1305 = vst [vmem:[#allocation3 + $0x1c] sm:$0xf] %v1289
    %1306 = vst [vmem:[#allocation3 + $0x20] sm:$0xf] %v1290
    %1307 = vst [vmem:[#allocation3 + $0x24] sm:$0xf] %v1291
    %1308 = vst [vmem:[#allocation3 + $0x28] sm:$0xf] %v1292
    %1309 = vst [vmem:[#allocation3 + $0x2c] sm:$0xf] %v1293
    %1310 = vst [vmem:[#allocation3 + $0x30] sm:$0xf] %v1294
    %1311 = vst [vmem:[#allocation3 + $0x34] sm:$0xf] %v1295
    %1312 = vst [vmem:[#allocation3 + $0x38] sm:$0xf] %v1296
    %1313 = vst [vmem:[#allocation3 + $0x3c] sm:$0xf] %v1297
    %v1314 = vld [vmem:[#allocation3] sm:$0xf]
    %v1315 = vld [vmem:[#allocation3 + $0x4] sm:$0xf]
    %v1316 = vld [vmem:[#allocation3 + $0x8] sm:$0xf]
    %v1317 = vld [vmem:[#allocation3 + $0xc] sm:$0xf]
    %v1318 = vld [vmem:[#allocation3 + $0x10] sm:$0xf]
    %v1319 = vld [vmem:[#allocation3 + $0x14] sm:$0xf]
    %v1320 = vld [vmem:[#allocation3 + $0x18] sm:$0xf]
    %v1321 = vld [vmem:[#allocation3 + $0x1c] sm:$0xf]
    %v1322 = vld [vmem:[#allocation3 + $0x20] sm:$0xf]
    %v1323 = vld [vmem:[#allocation3 + $0x24] sm:$0xf]
    %v1324 = vld [vmem:[#allocation3 + $0x28] sm:$0xf]
    %v1325 = vld [vmem:[#allocation3 + $0x2c] sm:$0xf]
    %v1326 = vld [vmem:[#allocation3 + $0x30] sm:$0xf]
    %v1327 = vld [vmem:[#allocation3 + $0x34] sm:$0xf]
    %v1328 = vld [vmem:[#allocation3 + $0x38] sm:$0xf]
    %v1329 = vld [vmem:[#allocation3 + $0x3c] sm:$0xf]
    %v1330 = vld [vmem:[%s4] sm:$0xf]
    %v1331 = vld [vmem:[%s4 + $0x4] sm:$0xf]
    %v1334 = vunpack.c.l.b16 %v1330
    %v1335 = vunpack.c.l.b16 %v1331
    %v1336 = vpack.c.b16 %v1335, %v1334
    %v1354 = vunpack.c.l.b16 %v1314
    %v1355 = vunpack.c.l.b16 %v1315
    %v1356 = vunpack.c.l.b16 %v1316
    %v1357 = vunpack.c.l.b16 %v1317
    %v1358 = vunpack.c.l.b16 %v1318
    %v1359 = vunpack.c.l.b16 %v1319
    %v1360 = vunpack.c.l.b16 %v1320
    %v1361 = vunpack.c.l.b16 %v1321
    %v1362 = vunpack.c.l.b16 %v1322
    %v1363 = vunpack.c.l.b16 %v1323
    %v1364 = vunpack.c.l.b16 %v1324
    %v1365 = vunpack.c.l.b16 %v1325
    %v1366 = vunpack.c.l.b16 %v1326
    %v1367 = vunpack.c.l.b16 %v1327
    %v1368 = vunpack.c.l.b16 %v1328
    %v1369 = vunpack.c.l.b16 %v1329
    %v1370 = vpack.c.b16 %v1355, %v1354
    %v1371 = vpack.c.b16 %v1357, %v1356
    %v1372 = vpack.c.b16 %v1359, %v1358
    %v1373 = vpack.c.b16 %v1361, %v1360
    %v1374 = vpack.c.b16 %v1363, %v1362
    %v1375 = vpack.c.b16 %v1365, %v1364
    %v1376 = vpack.c.b16 %v1367, %v1366
    %v1377 = vpack.c.b16 %v1369, %v1368
    %1386 = vmatpush.bf16.msra.mxu0 %v1377
    %1387 = vmatpush.bf16.msra.mxu0 %v1376
    %1388 = vmatpush.bf16.msra.mxu0 %v1375
    %1389 = vmatpush.bf16.msra.mxu0 %v1374
    %1390 = vmatpush.bf16.msra.mxu0 %v1373
    %1391 = vmatpush.bf16.msra.mxu0 %v1372
    %1392 = vmatpush.bf16.msra.mxu0 %v1371
    %1393 = vmatpush.bf16.msra.mxu0 %v1370
    %1394 = vmatmul.bf16.gmra.mxu0 %v1336
    %v1395 = vpop.f32.mrf.mxu0
    %v1396 = vadd.f32 0.0, %v1395
    %v1397 = vpop.f32.mrf.mxu0
    %v1398 = vadd.f32 0.0, %v1397
    %1399 = vdwg.mxu0
    %v1400 = vld [vmem:[%s5] sm:$0xff]
    %v1401 = vld [vmem:[%s5 + $0x8] sm:$0xff]
    %1403 = vset.pattern.permute.xlu0 0
    %1404 = vperm.xlu0 %1403, %v1400
    %v1405 = vpop.permute.xlu0 %1404
    %1408 = vset.pattern.permute.xlu0 0
    %1409 = vperm.xlu0 %1408, %v1401
    %v1410 = vpop.permute.xlu0 %1409
    %v1412 = vmul.f32 %v1396, %v1405
    %v1413 = vmul.f32 %v1398, %v1410
    %v1414 = vld [vmem:[#allocation10] sm:$0xf]
    %v1415 = vld [vmem:[#allocation10 + $0x4] sm:$0xf]
    %v1416 = vld [vmem:[#allocation10 + $0x8] sm:$0xf]
    %v1417 = vld [vmem:[#allocation10 + $0xc] sm:$0xf]
    %v1418 = vld [vmem:[#allocation10 + $0x10] sm:$0xf]
    %v1419 = vld [vmem:[#allocation10 + $0x14] sm:$0xf]
    %v1420 = vld [vmem:[#allocation10 + $0x18] sm:$0xf]
    %v1421 = vld [vmem:[#allocation10 + $0x1c] sm:$0xf]
    %v1422 = vld [vmem:[#allocation10 + $0x20] sm:$0xf]
    %v1423 = vld [vmem:[#allocation10 + $0x24] sm:$0xf]
    %v1424 = vld [vmem:[#allocation10 + $0x28] sm:$0xf]
    %v1425 = vld [vmem:[#allocation10 + $0x2c] sm:$0xf]
    %v1426 = vld [vmem:[#allocation10 + $0x30] sm:$0xf]
    %v1427 = vld [vmem:[#allocation10 + $0x34] sm:$0xf]
    %v1428 = vld [vmem:[#allocation10 + $0x38] sm:$0xf]
    %v1429 = vld [vmem:[#allocation10 + $0x3c] sm:$0xf]
    %v1430 = vpack.c.bf16 %v1413, %v1412
    %v1431 = vld [vmem:[#allocation12] sm:$0xf]
    %v1432 = vld [vmem:[#allocation12 + $0x4] sm:$0xf]
    %v1433 = vld [vmem:[#allocation12 + $0x8] sm:$0xf]
    %v1434 = vld [vmem:[#allocation12 + $0xc] sm:$0xf]
    %v1435 = vld [vmem:[#allocation12 + $0x10] sm:$0xf]
    %v1436 = vld [vmem:[#allocation12 + $0x14] sm:$0xf]
    %v1437 = vld [vmem:[#allocation12 + $0x18] sm:$0xf]
    %v1438 = vld [vmem:[#allocation12 + $0x1c] sm:$0xf]
    %v1439 = vld [vmem:[#allocation12 + $0x20] sm:$0xf]
    %v1440 = vld [vmem:[#allocation12 + $0x24] sm:$0xf]
    %v1441 = vld [vmem:[#allocation12 + $0x28] sm:$0xf]
    %v1442 = vld [vmem:[#allocation12 + $0x2c] sm:$0xf]
    %v1443 = vld [vmem:[#allocation12 + $0x30] sm:$0xf]
    %v1444 = vld [vmem:[#allocation12 + $0x34] sm:$0xf]
    %v1445 = vld [vmem:[#allocation12 + $0x38] sm:$0xf]
    %v1446 = vld [vmem:[#allocation12 + $0x3c] sm:$0xf]
    %v1463 = vunpack.c.l.b16 %v1431
    %v1464 = vunpack.c.l.b16 %v1432
    %v1465 = vunpack.c.l.b16 %v1433
    %v1466 = vunpack.c.l.b16 %v1434
    %v1467 = vunpack.c.l.b16 %v1435
    %v1468 = vunpack.c.l.b16 %v1436
    %v1469 = vunpack.c.l.b16 %v1437
    %v1470 = vunpack.c.l.b16 %v1438
    %v1471 = vunpack.c.l.b16 %v1439
    %v1472 = vunpack.c.l.b16 %v1440
    %v1473 = vunpack.c.l.b16 %v1441
    %v1474 = vunpack.c.l.b16 %v1442
    %v1475 = vunpack.c.l.b16 %v1443
    %v1476 = vunpack.c.l.b16 %v1444
    %v1477 = vunpack.c.l.b16 %v1445
    %v1478 = vunpack.c.l.b16 %v1446
    %v1479 = vpack.c.b16 %v1464, %v1463
    %v1480 = vpack.c.b16 %v1466, %v1465
    %v1481 = vpack.c.b16 %v1468, %v1467
    %v1482 = vpack.c.b16 %v1470, %v1469
    %v1483 = vpack.c.b16 %v1472, %v1471
    %v1484 = vpack.c.b16 %v1474, %v1473
    %v1485 = vpack.c.b16 %v1476, %v1475
    %v1486 = vpack.c.b16 %v1478, %v1477
    %1495 = vmatpush.bf16.msra.mxu0 %v1486
    %1496 = vmatpush.bf16.msra.mxu0 %v1485
    %1497 = vmatpush.bf16.msra.mxu0 %v1484
    %1498 = vmatpush.bf16.msra.mxu0 %v1483
    %1499 = vmatpush.bf16.msra.mxu0 %v1482
    %1500 = vmatpush.bf16.msra.mxu0 %v1481
    %1501 = vmatpush.bf16.msra.mxu0 %v1480
    %1502 = vmatpush.bf16.msra.mxu0 %v1479
    %1503 = vmatmul.bf16.gmra.mxu0 %v1430
    %v1504 = vpop.f32.mrf.mxu0
    %v1505 = vadd.f32 0.0, %v1504
    %v1506 = vpop.f32.mrf.mxu0
    %v1507 = vadd.f32 0.0, %v1506
    %1508 = vdwg.mxu0
    %v1525 = vunpack.c.l.b16 %v1414
    %v1526 = vunpack.c.l.b16 %v1415
    %v1527 = vunpack.c.l.b16 %v1416
    %v1528 = vunpack.c.l.b16 %v1417
    %v1529 = vunpack.c.l.b16 %v1418
    %v1530 = vunpack.c.l.b16 %v1419
    %v1531 = vunpack.c.l.b16 %v1420
    %v1532 = vunpack.c.l.b16 %v1421
    %v1533 = vunpack.c.l.b16 %v1422
    %v1534 = vunpack.c.l.b16 %v1423
    %v1535 = vunpack.c.l.b16 %v1424
    %v1536 = vunpack.c.l.b16 %v1425
    %v1537 = vunpack.c.l.b16 %v1426
    %v1538 = vunpack.c.l.b16 %v1427
    %v1539 = vunpack.c.l.b16 %v1428
    %v1540 = vunpack.c.l.b16 %v1429
    %v1541 = vpack.c.b16 %v1526, %v1525
    %v1542 = vpack.c.b16 %v1528, %v1527
    %v1543 = vpack.c.b16 %v1530, %v1529
    %v1544 = vpack.c.b16 %v1532, %v1531
    %v1545 = vpack.c.b16 %v1534, %v1533
    %v1546 = vpack.c.b16 %v1536, %v1535
    %v1547 = vpack.c.b16 %v1538, %v1537
    %v1548 = vpack.c.b16 %v1540, %v1539
    %1557 = vmatpush.bf16.msra.mxu0 %v1548
    %1558 = vmatpush.bf16.msra.mxu0 %v1547
    %1559 = vmatpush.bf16.msra.mxu0 %v1546
    %1560 = vmatpush.bf16.msra.mxu0 %v1545
    %1561 = vmatpush.bf16.msra.mxu0 %v1544
    %1562 = vmatpush.bf16.msra.mxu0 %v1543
    %1563 = vmatpush.bf16.msra.mxu0 %v1542
    %1564 = vmatpush.bf16.msra.mxu0 %v1541
    %1565 = vmatmul.bf16.gmra.mxu0 %v1370
    %v1566 = vpop.f32.mrf.mxu0
    %v1567 = vadd.f32 %v1505, %v1566
    %v1568 = vpop.f32.mrf.mxu0
    %v1569 = vadd.f32 %v1507, %v1568
    %1570 = vdwg.mxu0
    %v1571 = vld [vmem:[%s15] sm:$0x1]
    %v1573 = vperm.slane %v1571, 0
    %v1575 = vadd.f32 %v1567, %v1573
    %v1576 = vadd.f32 %v1569, %v1573
    %1577 = vst [vmem:[#allocation13] sm:$0xff] %v1575
    %1578 = vst [vmem:[#allocation13 + $0x8] sm:$0xff] %v1576
    // Predicated region
    $region86: #{_fused_forward.1} parent=1 // pred_check
      _
    $region87: #{_fused_forward.1} parent=1 // pred_check_branch
      %1580 = sbr.rel (0) target = $region89
    $region88: #{_fused_forward.1} parent=1 // pred_region
      %1582 = vsyncadd [#allocation6], 0
      %s1583 = sshll.u32 [#allocation13], 4
      %s1584 = int_to_ptr.vmem [resolvable:$true] %s1583
      %s1585 = sshll.u32 %s16, 4
      %s1586 = int_to_ptr.hbm [resolvable:$true] %s1585
      %1591 = dma.vmem_to_hbm [thread:$0]  %s1584, 256, %s1586, [#allocation6], 128, 128, 8
    $region89: #{_fused_forward.1} parent=1 // pred_fallthru
      _
    // Predicated region
    $region90: #{_fused_forward.1} parent=1 // pred_check
      _
    $region91: #{_fused_forward.1} parent=1 // pred_check_branch
      %1593 = sbr.rel (0) target = $region93
    $region92: #{_fused_forward.1} parent=1 // pred_region
      %1595 = dma.done [#allocation6], 256
    $region93: #{_fused_forward.1} parent=1 // pred_fallthru
      _
    %1596 = vsyncpa [#allocation5], 1
    %1597 = vsyncpa [#allocation8], 1
    %1598 = vsyncpa [#allocation11], 1
    %1599 = vsyncpa [#allocation6], 1

</llo_original>
